<compile_context>
chip_gen: v7x
topology: tpu7x:2x2x1
jax: 0.10.0
libtpu: 0.0.40
codegen_flags: <defaults>
</compile_context>

<pallas_src>
import jax
import jax.numpy as jnp
import numpy as np
from jax.experimental import pallas as pl
from jax.experimental.pallas import tpu as pltpu

EPS = 1e-5
DATA_OFF = 8   # f32 scratch: interior rows start on an 8-row sublane-tile boundary


def _banded_conv_weight(w_hwio, W):
    """HWIO (3,3,Ci,Co) conv kernel -> (3, W*Ci, W*Co) banded per-dy matrices.

    M[dy, wi*Ci+ci, wo*Co+co] = w[dy, wi-wo+1, ci, co] if 0 <= wi-wo+1 < 3 else 0,
    so `row(h+dy-1) @ M[dy]` summed over dy is the SAME-padded 3x3 conv of output
    row h; the W-boundary zero padding lives inside the banded matrix itself.
    One-time host-side weight prep (layout plumbing, not per-step compute).
    """
    kh, kw, Ci, Co = w_hwio.shape
    w_np = np.asarray(w_hwio, dtype=np.float32)
    wi = np.arange(W)[:, None]                      # input-column index
    wo = np.arange(W)[None, :]                      # output-column index
    dx = wi - wo + (kw // 2)
    valid = (dx >= 0) & (dx < kw)
    band = w_np[:, np.clip(dx, 0, kw - 1)] * valid[None, :, :, None, None]
    band = band.transpose(0, 1, 3, 2, 4)            # (kh, W_in, Ci, W_out, Co)
    return band.reshape(kh, W * Ci, W * Co)


def _make_double_conv_kernel(N, H, W, Cin, Cout, mxu_dtype):
    L1, L2 = W * Cin, W * Cout
    LP = max(L1, L2)            # lane width of the scratch / per-dy lhs chunks
    NH = N * H

    def kernel(x_ref, w_ref, pm_ref, g_ref, bt_ref, o_ref, pad_ref):
        # x_ref  : (N, H, W*Cin)         unpadded, lane-folded input (no dead rows)
        # w_ref  : (3, 3*LP, L2)         per-layer dy-fused banded weights (mxu_dtype)
        # pm_ref : (L2, L2)              per-channel averaging matrix (1/(N*H*W) folded)
        # g_ref  : (3, L2)  BN gamma (lane-folded); bt_ref : (3, L2)  BN beta
        # o_ref  : (N, H, L2)            lane-dense output
        # pad_ref: (N, DATA_OFF+H+1, LP) f32 row-halo scratch (activations stay f32;
        #                                only MXU operands are cast to mxu_dtype)

        # One-time init: zero halo rows + interior (so layer-1's unused lane padding
        # [L1:LP) reads as zero), then drop the real input into the interior.
        pad_ref[:, DATA_OFF - 1:DATA_OFF + H + 1, :] = jnp.zeros(
            (N, H + 2, LP), pad_ref.dtype)
        pad_ref[:, DATA_OFF:DATA_OFF + H, :L1] = x_ref[...]

        pmean = pm_ref[...]                                    # hoisted once

        def conv(layer):
            # 3x3 SAME conv as ONE row-matmul with K = 3*LP.  dx taps and the
            # W-boundary zeros are folded into the banded weight; the H boundary
            # comes from the zero halo rows; the three dy row-windows are
            # lane-concatenated (128-lane aligned chunks).  No conv bias: under the
            # immediately following training-mode BatchNorm it is added and then
            # exactly removed by the batch-mean subtraction (do NOT reuse these
            # fused weights for an eval-mode / running-stats BN variant).
            lhs = jnp.concatenate(
                [pad_ref[:, DATA_OFF - 1 + dy:DATA_OFF - 1 + dy + H, :]
                 for dy in range(3)], axis=-1)                 # (N, H, 3*LP) f32
            # Value-level re-tiling only: H is a multiple of the sublane tile and
            # 3*LP a multiple of 128 lanes, so this reshape is a vreg relabeling of
            # a freshly computed value, not a VMEM copy.
            lhs2d = lhs.astype(mxu_dtype).reshape(NH, 3 * LP)
            return jnp.dot(lhs2d, w_ref[layer],
                           preferred_element_type=jnp.float32)  # (NH, L2) f32

        def bn_relu(acc, layer):
            # Training-mode BatchNorm2d folded into one scale/shift FMA + ReLU.
            # Single pass sum / sum-of-squares; the per-channel reduce across the
            # W-folded lane groups AND the broadcast back are ONE small matmul for
            # both stats (pmean already carries the 1/(N*H*W) factor).
            s = jnp.sum(acc, axis=0, keepdims=True)            # (1, L2)
            ss = jnp.sum(acc * acc, axis=0, keepdims=True)     # (1, L2)
            red = jnp.dot(jnp.concatenate([s, ss], axis=0), pmean,
                          preferred_element_type=jnp.float32)  # (2, L2)
            mean, ex2 = red[0:1, :], red[1:2, :]
            # NOTE: E[x^2]-E[x]^2 is cancellation-prone for huge activations; fine
            # at BN scales and clamped.  TODO(synk): two-pass variance if reused on
            # un-normalized data.
            var = jnp.maximum(ex2 - mean * mean, 0.0)          # biased batch var
            scale = g_ref[layer:layer + 1, :] * jax.lax.rsqrt(var + EPS)   # EUP
            shift = bt_ref[layer:layer + 1, :] - scale * mean
            return jnp.maximum(acc * scale + shift, 0.0)       # one FMA + max pass

        y = bn_relu(conv(0), 0)
        for layer in (1, 2):
            # Aligned, lane-dense interior writeback (value re-tiling, stays f32).
            pad_ref[:, DATA_OFF:DATA_OFF + H, :L2] = y.reshape(N, H, L2)
            y = bn_relu(conv(layer), layer)

        o_ref[...] = y.reshape(N, H, L2).astype(o_ref.dtype)   # lane-dense store

    return kernel


def double_conv(x_nchw, weights, biases, gammas, betas, *,
                mxu_dtype=jnp.bfloat16, out_dtype=jnp.float32):
    """Forward of the PyTorch DoubleConv module (training-mode BN), fully fused.

    `biases` accepted for interface parity with nn.Conv2d but unused: each conv
    bias is exactly cancelled by the batch-mean subtraction of the training-mode
    BatchNorm that immediately follows it.
    mxu_dtype: dtype fed to the MXU (bf16 default on ALL generations — v5e's MXU is
    native bf16 too); activations, scratch and BN statistics stay f32 regardless.
    out_dtype: pass jnp.bfloat16 to halve output HBM writeback if acceptable.
    """
    del biases
    w1, w2, w3 = weights                 # HWIO: (3,3,Cin,Cout), (3,3,Cout,Cout) x2
    N, Cin, H, W = x_nchw.shape
    Cout = w1.shape[-1]
    L1, L2 = W * Cin, W * Cout
    LP = max(L1, L2)
    HB = DATA_OFF + H + 1

    # Layout glue: NCHW -> lane-folded (N, H, W*Cin).  No halo rows or lane padding
    # are shipped from HBM; the kernel builds its own f32 row-halo scratch.
    x_fold = jnp.transpose(x_nchw, (0, 2, 3, 1)).reshape(N, H, L1).astype(jnp.float32)

    # One-time weight prep: per-layer banded row-conv matrices with the three dy
    # taps fused along K (layer-1 K chunks zero-padded from W*Cin to LP so every
    # layer is the same single (NH, 3*LP) x (3*LP, L2) matmul).
    def fused(w, lin):
        band = _banded_conv_weight(w, W)                     # (3, lin, L2) f32
        full = np.zeros((3, LP, L2), np.float32)
        full[:, :lin, :] = band
        return full.reshape(3 * LP, L2)
    w_all = jnp.asarray(np.stack([fused(w1, L1), fused(w2, L2),
                                  fused(w3, L2)])).astype(mxu_dtype)

    # Per-channel averaging matrix in the folded lane layout: reduces over the W
    # groups and broadcasts back, with the 1/(N*H*W) count folded in.  Kept f32 —
    # BN statistics stay f32 on every path.
    lane = np.arange(L2)
    pmean = jnp.asarray(
        (lane[:, None] % Cout == lane[None, :] % Cout).astype(np.float32)
        / float(N * H * W))

    # BN affine params broadcast into the folded lane layout (glue).
    g_f = jnp.stack([jnp.tile(g.astype(jnp.float32), W) for g in gammas])   # (3, L2)
    bt_f = jnp.stack([jnp.tile(b.astype(jnp.float32), W) for b in betas])   # (3, L2)

    # VMEM budget per generation: everything below is resident at once (no grid at
    # these toy shapes), so size the scoped limit from the actual buffers (+4x
    # headroom for compiler temps) and cap below physical VMEM (v7x 64 MiB,
    # v5e/v6e 128 MiB) instead of hard-coding one number.
    def nbytes(shape, dt):
        return int(np.prod(shape)) * np.dtype(dt).itemsize
    resident = (nbytes(x_fold.shape, jnp.float32)
                + nbytes(w_all.shape, mxu_dtype)
                + nbytes(pmean.shape, jnp.float32)
                + 2 * nbytes(g_f.shape, jnp.float32)
                + nbytes((N, H, L2), out_dtype)
                + nbytes((N, HB, LP), jnp.float32))
    try:
        vmem_cap = int(pltpu.get_tpu_info().vmem_capacity_bytes)
    except Exception:
        vmem_cap = 64 * 1024 * 1024          # v7x floor — safe on every generation
    vmem_limit = int(min(max(4 * resident, 32 * 1024 * 1024), (vmem_cap * 3) // 4))

    vmem = pl.BlockSpec(memory_space=pltpu.MemorySpace.VMEM)
    out = pl.pallas_call(
        _make_double_conv_kernel(N, H, W, Cin, Cout, mxu_dtype),
        out_shape=jax.ShapeDtypeStruct((N, H, L2), out_dtype),
        in_specs=[vmem] * 5,
        out_specs=vmem,
        scratch_shapes=[pltpu.VMEM((N, HB, LP), jnp.float32)],
        compiler_params=pltpu.CompilerParams(vmem_limit_bytes=vmem_limit),
    )(x_fold, w_all, pmean, g_f, bt_f)

    # (N, H, W*Cout) -> NCHW (glue)
    return jnp.transpose(out.reshape(N, H, W, Cout), (0, 3, 1, 2))


def reference(x_nchw, weights, biases, gammas, betas):
    # Faithful float32 reference of the PyTorch module's forward (training-mode BN,
    # biased batch variance, conv bias included).
    y = jnp.transpose(x_nchw, (0, 2, 3, 1))
    for w, b, g, bt in zip(weights, biases, gammas, betas):
        y = jax.lax.conv_general_dilated(
            y, w, (1, 1), "SAME",
            dimension_numbers=("NHWC", "HWIO", "NHWC")) + b
        mean = jnp.mean(y, axis=(0, 1, 2), keepdims=True)
        var = jnp.mean((y - mean) ** 2, axis=(0, 1, 2), keepdims=True)
        y = g * (y - mean) * jax.lax.rsqrt(var + EPS) + bt
        y = jnp.maximum(y, 0.0)
    return jnp.transpose(y, (0, 3, 1, 2))


if __name__ == "__main__":
    N, in_ch, out_ch, H, W = 2, 4, 8, 16, 16
    key = jax.random.PRNGKey(0)
    ks = jax.random.split(key, 8)

    weights = (
        0.2 * jax.random.normal(ks[0], (3, 3, in_ch, out_ch), jnp.float32),
        0.2 * jax.random.normal(ks[1], (3, 3, out_ch, out_ch), jnp.float32),
        0.2 * jax.random.normal(ks[2], (3, 3, out_ch, out_ch), jnp.float32),
    )
    biases = tuple(0.1 * jax.random.normal(ks[3 + i], (out_ch,), jnp.float32)
                   for i in range(3))
    gammas = tuple(1.0 + 0.1 * (i + 1) * jnp.arange(out_ch, dtype=jnp.float32) / out_ch
                   for i in range(3))
    betas = tuple(0.05 * (i + 1) * jnp.arange(out_ch, dtype=jnp.float32) / out_ch
                  for i in range(3))
    x = jax.random.normal(ks[6], (N, in_ch, H, W), jnp.float32)

    ref = reference(x, weights, biases, gammas, betas)

    # f32-fed MXU path: tight correctness check against the module reference.
    out_f32 = jax.block_until_ready(
        double_conv(x, weights, biases, gammas, betas, mxu_dtype=jnp.float32))
    assert out_f32.shape == (N, out_ch, H, W)
    max_err_f32 = jnp.max(jnp.abs(out_f32 - ref))
    assert jnp.allclose(out_f32, ref, atol=1e-3, rtol=1e-3), \
        f"f32 max abs err = {max_err_f32}"

    # Default bf16 MXU-feed path (all generations): f32 activations / scratch / BN
    # statistics, only the matmul operands are bf16, so this is tighter than a
    # full-bf16 pipeline; loose sanity bound with large margin.
    out_bf16 = jax.block_until_ready(
        double_conv(x, weights, biases, gammas, betas))
    assert out_bf16.shape == (N, out_ch, H, W)
    max_err = jnp.max(jnp.abs(out_bf16 - ref))
    mean_err = jnp.mean(jnp.abs(out_bf16 - ref))
    assert (max_err < 0.35) and (mean_err < 0.04), \
        f"bf16 sanity check failed: max={max_err} mean={mean_err}"

    print("KERNEL_OK")
</pallas_src>

<mosaic_0001>
module attributes {stable_mosaic.version = 11 : i64} {
  func.func @kernel(%arg0: memref<2x16x64xf32, #tpu.memory_space<vmem>>, %arg1: memref<3x384x128xf32, #tpu.memory_space<vmem>>, %arg2: memref<128x128xf32, #tpu.memory_space<vmem>>, %arg3: memref<3x128xf32, #tpu.memory_space<vmem>>, %arg4: memref<3x128xf32, #tpu.memory_space<vmem>>, %arg5: memref<2x16x128xf32, #tpu.memory_space<vmem>>, %arg6: memref<2x25x128xf32, #tpu.memory_space<vmem>>) attributes {dimension_semantics = [], scalar_prefetch = 0 : i64, scratch_operands = 1 : i64, tpu.core_type = #tpu.core_type<tc>} {
    %cst = arith.constant 0.000000e+00 : f32
    %0 = vector.broadcast %cst : f32 to vector<2x18x128xf32>
    %c0 = arith.constant 0 : index
    %c7 = arith.constant 7 : index
    %c0_0 = arith.constant 0 : index
    %1 = vector.load %arg6[%c0, %c7, %c0_0] : memref<2x25x128xf32, #tpu.memory_space<vmem>>, vector<2x18x128xf32>
    tpu.vector_store %arg6[%c0, %c7, %c0_0], %0 {strides = array<i32>} : memref<2x25x128xf32, #tpu.memory_space<vmem>>, vector<2x18x128xf32>,
    %c0_1 = arith.constant 0 : index
    %c0_2 = arith.constant 0 : index
    %c0_3 = arith.constant 0 : index
    %2 = vector.load %arg0[%c0_1, %c0_2, %c0_3] : memref<2x16x64xf32, #tpu.memory_space<vmem>>, vector<2x16x64xf32>
    %c0_4 = arith.constant 0 : index
    %c8 = arith.constant 8 : index
    %c0_5 = arith.constant 0 : index
    %3 = vector.load %arg6[%c0_4, %c8, %c0_5] : memref<2x25x128xf32, #tpu.memory_space<vmem>>, vector<2x16x64xf32>
    tpu.vector_store %arg6[%c0_4, %c8, %c0_5], %2 {strides = array<i32>} : memref<2x25x128xf32, #tpu.memory_space<vmem>>, vector<2x16x64xf32>,
    %c0_6 = arith.constant 0 : index
    %c0_7 = arith.constant 0 : index
    %4 = vector.load %arg2[%c0_6, %c0_7] : memref<128x128xf32, #tpu.memory_space<vmem>>, vector<128x128xf32>
    %c0_8 = arith.constant 0 : index
    %c7_9 = arith.constant 7 : index
    %c0_10 = arith.constant 0 : index
    %5 = vector.load %arg6[%c0_8, %c7_9, %c0_10] : memref<2x25x128xf32, #tpu.memory_space<vmem>>, vector<2x16x128xf32>
    %c0_11 = arith.constant 0 : index
    %c8_12 = arith.constant 8 : index
    %c0_13 = arith.constant 0 : index
    %6 = vector.load %arg6[%c0_11, %c8_12, %c0_13] : memref<2x25x128xf32, #tpu.memory_space<vmem>>, vector<2x16x128xf32>
    %c0_14 = arith.constant 0 : index
    %c9 = arith.constant 9 : index
    %c0_15 = arith.constant 0 : index
    %7 = vector.load %arg6[%c0_14, %c9, %c0_15] : memref<2x25x128xf32, #tpu.memory_space<vmem>>, vector<2x16x128xf32>
    %8 = tpu.concatenate %5, %6, %7 in 2 : vector<2x16x128xf32>, vector<2x16x128xf32>, vector<2x16x128xf32> -> vector<2x16x384xf32>
    %9 = vector.shape_cast %8 : vector<2x16x384xf32> to vector<32x384xf32>
    %c0_16 = arith.constant 0 : index
    %c0_17 = arith.constant 0 : index
    %c0_18 = arith.constant 0 : index
    %10 = vector.load %arg1[%c0_16, %c0_17, %c0_18] : memref<3x384x128xf32, #tpu.memory_space<vmem>>, vector<1x384x128xf32>
    %11 = vector.shape_cast %10 : vector<1x384x128xf32> to vector<384x128xf32>
    %cst_19 = arith.constant dense<0.000000e+00> : vector<32x128xf32>
    %12 = tpu.matmul %9, %11, %cst_19 {dimension_numbers = #tpu.dot_dimension_numbers<[1], [0], [0], [1], [0, 0, 1, 1], [], []>} : vector<32x384xf32>, vector<384x128xf32>, vector<32x128xf32> -> vector<32x128xf32>
    %cst_20 = arith.constant dense<0.000000e+00> : vector<128xf32>
    %13 = vector.multi_reduction <add>, %12, %cst_20 [0] : vector<32x128xf32> to vector<128xf32>
    %14 = vector.shape_cast %13 : vector<128xf32> to vector<1x128xf32>
    %15 = arith.mulf %12, %12 : vector<32x128xf32>
    %cst_21 = arith.constant dense<0.000000e+00> : vector<128xf32>
    %16 = vector.multi_reduction <add>, %15, %cst_21 [0] : vector<32x128xf32> to vector<128xf32>
    %17 = vector.shape_cast %16 : vector<128xf32> to vector<1x128xf32>
    %18 = tpu.concatenate %14, %17 in 0 : vector<1x128xf32>, vector<1x128xf32> -> vector<2x128xf32>
    %cst_22 = arith.constant dense<0.000000e+00> : vector<2x128xf32>
    %19 = tpu.matmul %18, %4, %cst_22 {dimension_numbers = #tpu.dot_dimension_numbers<[1], [0], [0], [1], [0, 0, 1, 1], [], []>} : vector<2x128xf32>, vector<128x128xf32>, vector<2x128xf32> -> vector<2x128xf32>
    %20 = vector.extract_strided_slice %19 {offsets = [0, 0], sizes = [1, 128], strides = [1, 1]} : vector<2x128xf32> to vector<1x128xf32>
    %21 = vector.extract_strided_slice %19 {offsets = [1, 0], sizes = [1, 128], strides = [1, 1]} : vector<2x128xf32> to vector<1x128xf32>
    %22 = arith.mulf %20, %20 : vector<1x128xf32>
    %23 = arith.subf %21, %22 : vector<1x128xf32>
    %cst_23 = arith.constant 0.000000e+00 : f32
    %24 = vector.broadcast %cst_23 : f32 to vector<1x128xf32>
    %25 = arith.maximumf %23, %24 : vector<1x128xf32>
    %c0_24 = arith.constant 0 : index
    %c0_25 = arith.constant 0 : index
    %26 = vector.load %arg3[%c0_24, %c0_25] : memref<3x128xf32, #tpu.memory_space<vmem>>, vector<1x128xf32>
    %cst_26 = arith.constant 9.99999974E-6 : f32
    %27 = vector.broadcast %cst_26 : f32 to vector<1x128xf32>
    %28 = arith.addf %25, %27 : vector<1x128xf32>
    %29 = math.rsqrt %28 : vector<1x128xf32>
    %30 = arith.mulf %26, %29 : vector<1x128xf32>
    %c0_27 = arith.constant 0 : index
    %c0_28 = arith.constant 0 : index
    %31 = vector.load %arg4[%c0_27, %c0_28] : memref<3x128xf32, #tpu.memory_space<vmem>>, vector<1x128xf32>
    %32 = arith.mulf %30, %20 : vector<1x128xf32>
    %33 = arith.subf %31, %32 : vector<1x128xf32>
    %34 = vector.broadcast %30 : vector<1x128xf32> to vector<32x128xf32>
    %35 = arith.mulf %12, %34 : vector<32x128xf32>
    %36 = vector.broadcast %33 : vector<1x128xf32> to vector<32x128xf32>
    %37 = arith.addf %35, %36 : vector<32x128xf32>
    %cst_29 = arith.constant 0.000000e+00 : f32
    %38 = vector.broadcast %cst_29 : f32 to vector<32x128xf32>
    %39 = arith.maximumf %37, %38 : vector<32x128xf32>
    %40 = vector.shape_cast %39 : vector<32x128xf32> to vector<2x16x128xf32>
    %c0_30 = arith.constant 0 : index
    %c8_31 = arith.constant 8 : index
    %c0_32 = arith.constant 0 : index
    %41 = vector.load %arg6[%c0_30, %c8_31, %c0_32] : memref<2x25x128xf32, #tpu.memory_space<vmem>>, vector<2x16x128xf32>
    tpu.vector_store %arg6[%c0_30, %c8_31, %c0_32], %40 {strides = array<i32>} : memref<2x25x128xf32, #tpu.memory_space<vmem>>, vector<2x16x128xf32>,
    %c0_33 = arith.constant 0 : index
    %c7_34 = arith.constant 7 : index
    %c0_35 = arith.constant 0 : index
    %42 = vector.load %arg6[%c0_33, %c7_34, %c0_35] : memref<2x25x128xf32, #tpu.memory_space<vmem>>, vector<2x16x128xf32>
    %c0_36 = arith.constant 0 : index
    %c8_37 = arith.constant 8 : index
    %c0_38 = arith.constant 0 : index
    %43 = vector.load %arg6[%c0_36, %c8_37, %c0_38] : memref<2x25x128xf32, #tpu.memory_space<vmem>>, vector<2x16x128xf32>
    %c0_39 = arith.constant 0 : index
    %c9_40 = arith.constant 9 : index
    %c0_41 = arith.constant 0 : index
    %44 = vector.load %arg6[%c0_39, %c9_40, %c0_41] : memref<2x25x128xf32, #tpu.memory_space<vmem>>, vector<2x16x128xf32>
    %45 = tpu.concatenate %42, %43, %44 in 2 : vector<2x16x128xf32>, vector<2x16x128xf32>, vector<2x16x128xf32> -> vector<2x16x384xf32>
    %46 = vector.shape_cast %45 : vector<2x16x384xf32> to vector<32x384xf32>
    %c1 = arith.constant 1 : index
    %c0_42 = arith.constant 0 : index
    %c0_43 = arith.constant 0 : index
    %47 = vector.load %arg1[%c1, %c0_42, %c0_43] : memref<3x384x128xf32, #tpu.memory_space<vmem>>, vector<1x384x128xf32>
    %48 = vector.shape_cast %47 : vector<1x384x128xf32> to vector<384x128xf32>
    %cst_44 = arith.constant dense<0.000000e+00> : vector<32x128xf32>
    %49 = tpu.matmul %46, %48, %cst_44 {dimension_numbers = #tpu.dot_dimension_numbers<[1], [0], [0], [1], [0, 0, 1, 1], [], []>} : vector<32x384xf32>, vector<384x128xf32>, vector<32x128xf32> -> vector<32x128xf32>
    %cst_45 = arith.constant dense<0.000000e+00> : vector<128xf32>
    %50 = vector.multi_reduction <add>, %49, %cst_45 [0] : vector<32x128xf32> to vector<128xf32>
    %51 = vector.shape_cast %50 : vector<128xf32> to vector<1x128xf32>
    %52 = arith.mulf %49, %49 : vector<32x128xf32>
    %cst_46 = arith.constant dense<0.000000e+00> : vector<128xf32>
    %53 = vector.multi_reduction <add>, %52, %cst_46 [0] : vector<32x128xf32> to vector<128xf32>
    %54 = vector.shape_cast %53 : vector<128xf32> to vector<1x128xf32>
    %55 = tpu.concatenate %51, %54 in 0 : vector<1x128xf32>, vector<1x128xf32> -> vector<2x128xf32>
    %cst_47 = arith.constant dense<0.000000e+00> : vector<2x128xf32>
    %56 = tpu.matmul %55, %4, %cst_47 {dimension_numbers = #tpu.dot_dimension_numbers<[1], [0], [0], [1], [0, 0, 1, 1], [], []>} : vector<2x128xf32>, vector<128x128xf32>, vector<2x128xf32> -> vector<2x128xf32>
    %57 = vector.extract_strided_slice %56 {offsets = [0, 0], sizes = [1, 128], strides = [1, 1]} : vector<2x128xf32> to vector<1x128xf32>
    %58 = vector.extract_strided_slice %56 {offsets = [1, 0], sizes = [1, 128], strides = [1, 1]} : vector<2x128xf32> to vector<1x128xf32>
    %59 = arith.mulf %57, %57 : vector<1x128xf32>
    %60 = arith.subf %58, %59 : vector<1x128xf32>
    %cst_48 = arith.constant 0.000000e+00 : f32
    %61 = vector.broadcast %cst_48 : f32 to vector<1x128xf32>
    %62 = arith.maximumf %60, %61 : vector<1x128xf32>
    %c1_49 = arith.constant 1 : index
    %c0_50 = arith.constant 0 : index
    %63 = vector.load %arg3[%c1_49, %c0_50] : memref<3x128xf32, #tpu.memory_space<vmem>>, vector<1x128xf32>
    %cst_51 = arith.constant 9.99999974E-6 : f32
    %64 = vector.broadcast %cst_51 : f32 to vector<1x128xf32>
    %65 = arith.addf %62, %64 : vector<1x128xf32>
    %66 = math.rsqrt %65 : vector<1x128xf32>
    %67 = arith.mulf %63, %66 : vector<1x128xf32>
    %c1_52 = arith.constant 1 : index
    %c0_53 = arith.constant 0 : index
    %68 = vector.load %arg4[%c1_52, %c0_53] : memref<3x128xf32, #tpu.memory_space<vmem>>, vector<1x128xf32>
    %69 = arith.mulf %67, %57 : vector<1x128xf32>
    %70 = arith.subf %68, %69 : vector<1x128xf32>
    %71 = vector.broadcast %67 : vector<1x128xf32> to vector<32x128xf32>
    %72 = arith.mulf %49, %71 : vector<32x128xf32>
    %73 = vector.broadcast %70 : vector<1x128xf32> to vector<32x128xf32>
    %74 = arith.addf %72, %73 : vector<32x128xf32>
    %cst_54 = arith.constant 0.000000e+00 : f32
    %75 = vector.broadcast %cst_54 : f32 to vector<32x128xf32>
    %76 = arith.maximumf %74, %75 : vector<32x128xf32>
    %77 = vector.shape_cast %76 : vector<32x128xf32> to vector<2x16x128xf32>
    %c0_55 = arith.constant 0 : index
    %c8_56 = arith.constant 8 : index
    %c0_57 = arith.constant 0 : index
    %78 = vector.load %arg6[%c0_55, %c8_56, %c0_57] : memref<2x25x128xf32, #tpu.memory_space<vmem>>, vector<2x16x128xf32>
    tpu.vector_store %arg6[%c0_55, %c8_56, %c0_57], %77 {strides = array<i32>} : memref<2x25x128xf32, #tpu.memory_space<vmem>>, vector<2x16x128xf32>,
    %c0_58 = arith.constant 0 : index
    %c7_59 = arith.constant 7 : index
    %c0_60 = arith.constant 0 : index
    %79 = vector.load %arg6[%c0_58, %c7_59, %c0_60] : memref<2x25x128xf32, #tpu.memory_space<vmem>>, vector<2x16x128xf32>
    %c0_61 = arith.constant 0 : index
    %c8_62 = arith.constant 8 : index
    %c0_63 = arith.constant 0 : index
    %80 = vector.load %arg6[%c0_61, %c8_62, %c0_63] : memref<2x25x128xf32, #tpu.memory_space<vmem>>, vector<2x16x128xf32>
    %c0_64 = arith.constant 0 : index
    %c9_65 = arith.constant 9 : index
    %c0_66 = arith.constant 0 : index
    %81 = vector.load %arg6[%c0_64, %c9_65, %c0_66] : memref<2x25x128xf32, #tpu.memory_space<vmem>>, vector<2x16x128xf32>
    %82 = tpu.concatenate %79, %80, %81 in 2 : vector<2x16x128xf32>, vector<2x16x128xf32>, vector<2x16x128xf32> -> vector<2x16x384xf32>
    %83 = vector.shape_cast %82 : vector<2x16x384xf32> to vector<32x384xf32>
    %c2 = arith.constant 2 : index
    %c0_67 = arith.constant 0 : index
    %c0_68 = arith.constant 0 : index
    %84 = vector.load %arg1[%c2, %c0_67, %c0_68] : memref<3x384x128xf32, #tpu.memory_space<vmem>>, vector<1x384x128xf32>
    %85 = vector.shape_cast %84 : vector<1x384x128xf32> to vector<384x128xf32>
    %cst_69 = arith.constant dense<0.000000e+00> : vector<32x128xf32>
    %86 = tpu.matmul %83, %85, %cst_69 {dimension_numbers = #tpu.dot_dimension_numbers<[1], [0], [0], [1], [0, 0, 1, 1], [], []>} : vector<32x384xf32>, vector<384x128xf32>, vector<32x128xf32> -> vector<32x128xf32>
    %cst_70 = arith.constant dense<0.000000e+00> : vector<128xf32>
    %87 = vector.multi_reduction <add>, %86, %cst_70 [0] : vector<32x128xf32> to vector<128xf32>
    %88 = vector.shape_cast %87 : vector<128xf32> to vector<1x128xf32>
    %89 = arith.mulf %86, %86 : vector<32x128xf32>
    %cst_71 = arith.constant dense<0.000000e+00> : vector<128xf32>
    %90 = vector.multi_reduction <add>, %89, %cst_71 [0] : vector<32x128xf32> to vector<128xf32>
    %91 = vector.shape_cast %90 : vector<128xf32> to vector<1x128xf32>
    %92 = tpu.concatenate %88, %91 in 0 : vector<1x128xf32>, vector<1x128xf32> -> vector<2x128xf32>
    %cst_72 = arith.constant dense<0.000000e+00> : vector<2x128xf32>
    %93 = tpu.matmul %92, %4, %cst_72 {dimension_numbers = #tpu.dot_dimension_numbers<[1], [0], [0], [1], [0, 0, 1, 1], [], []>} : vector<2x128xf32>, vector<128x128xf32>, vector<2x128xf32> -> vector<2x128xf32>
    %94 = vector.extract_strided_slice %93 {offsets = [0, 0], sizes = [1, 128], strides = [1, 1]} : vector<2x128xf32> to vector<1x128xf32>
    %95 = vector.extract_strided_slice %93 {offsets = [1, 0], sizes = [1, 128], strides = [1, 1]} : vector<2x128xf32> to vector<1x128xf32>
    %96 = arith.mulf %94, %94 : vector<1x128xf32>
    %97 = arith.subf %95, %96 : vector<1x128xf32>
    %cst_73 = arith.constant 0.000000e+00 : f32
    %98 = vector.broadcast %cst_73 : f32 to vector<1x128xf32>
    %99 = arith.maximumf %97, %98 : vector<1x128xf32>
    %c2_74 = arith.constant 2 : index
    %c0_75 = arith.constant 0 : index
    %100 = vector.load %arg3[%c2_74, %c0_75] : memref<3x128xf32, #tpu.memory_space<vmem>>, vector<1x128xf32>
    %cst_76 = arith.constant 9.99999974E-6 : f32
    %101 = vector.broadcast %cst_76 : f32 to vector<1x128xf32>
    %102 = arith.addf %99, %101 : vector<1x128xf32>
    %103 = math.rsqrt %102 : vector<1x128xf32>
    %104 = arith.mulf %100, %103 : vector<1x128xf32>
    %c2_77 = arith.constant 2 : index
    %c0_78 = arith.constant 0 : index
    %105 = vector.load %arg4[%c2_77, %c0_78] : memref<3x128xf32, #tpu.memory_space<vmem>>, vector<1x128xf32>
    %106 = arith.mulf %104, %94 : vector<1x128xf32>
    %107 = arith.subf %105, %106 : vector<1x128xf32>
    %108 = vector.broadcast %104 : vector<1x128xf32> to vector<32x128xf32>
    %109 = arith.mulf %86, %108 : vector<32x128xf32>
    %110 = vector.broadcast %107 : vector<1x128xf32> to vector<32x128xf32>
    %111 = arith.addf %109, %110 : vector<32x128xf32>
    %cst_79 = arith.constant 0.000000e+00 : f32
    %112 = vector.broadcast %cst_79 : f32 to vector<32x128xf32>
    %113 = arith.maximumf %111, %112 : vector<32x128xf32>
    %114 = vector.shape_cast %113 : vector<32x128xf32> to vector<2x16x128xf32>
    %c0_80 = arith.constant 0 : index
    %c0_81 = arith.constant 0 : index
    %c0_82 = arith.constant 0 : index
    %115 = vector.load %arg5[%c0_80, %c0_81, %c0_82] : memref<2x16x128xf32, #tpu.memory_space<vmem>>, vector<2x16x128xf32>
    tpu.vector_store %arg5[%c0_80, %c0_81, %c0_82], %114 {strides = array<i32>} : memref<2x16x128xf32, #tpu.memory_space<vmem>>, vector<2x16x128xf32>,
    return
  }
}

</mosaic_0001>

<llo_original>
// kernel: tpu_custom_call.1
$region0: #{tpu_custom_call.1}
  #allocation0 [shape = 'u32[]', space=smem, size = 0x4, offset = 0x4, fixed_abs, tag = 'smem constant byte address 0x4 - core index']
  #allocation1 [shape = 'u32[144,128]{1,0:T(1,128)}', space=vmem, size = 0x12000, scoped, tag = 'internal scratch']
  #allocation2 [shape = 'f32[2,25,128]{2,1,0:T(8,128)}', space=vmem, size = 0x8000, scoped, tag = 'scratch operand']
  %s0 = inlined_call_operand.hbm [shape: f32[2,16,64], index: 0, kind: input, shape index: {}]
  %s1 = inlined_call_operand.hbm [shape: f32[3,384,128], index: 1, kind: input, shape index: {}]
  %s2 = inlined_call_operand.hbm [shape: f32[128,128], index: 2, kind: input, shape index: {}]
  %s3 = inlined_call_operand.vmem [shape: f32[3,128], index: 3, kind: input, shape index: {}]
  %s4 = inlined_call_operand.vmem [shape: f32[3,128], index: 4, kind: input, shape index: {}]
  %s5 = inlined_call_operand.hbm [shape: f32[2,16,128], index: 5, kind: output, shape index: {}]
  %s6 = sld [smem:[#allocation0]]
  $region42: #{tpu_custom_call.1} parent=0
    _
  %s8 = ssub.s32 1, %s6
  %s9 = scalar_select 0, %s8, %s6
  $region1: #{tpu_custom_call.1} parent=0
    #allocation3 [shape = 'u8[16384]{0}', space=vmem, size = 0x4000, scoped, tag = 'input window, operand 0, single buffered']
    #allocation4 [shape = 's32[1]{0}', space=sflag, size = 0x4, scoped, tag = 'scoped memory for tpu_custom_call.1']
    #allocation5 [shape = 's32[1]{0}', space=sflag, size = 0x4, scoped, tag = 'scoped memory for tpu_custom_call.1']
    #allocation6 [shape = 'u8[589824]{0}', space=vmem, size = 0x90000, scoped, tag = 'input window, operand 1, single buffered']
    #allocation7 [shape = 's32[1]{0}', space=sflag, size = 0x4, scoped, tag = 'scoped memory for tpu_custom_call.1']
    #allocation8 [shape = 'u8[65536]{0}', space=vmem, size = 0x10000, scoped, tag = 'input window, operand 2, single buffered']
    #allocation9 [shape = 'u8[16384]{0}', space=vmem, size = 0x4000, scoped, tag = 'output window, operand 0, single buffered']
    %10 = vsyncpa [#allocation4], 0
    %11 = vsyncpa [#allocation7], 0
    %12 = vsyncpa [#allocation5], 0
    // Predicated region
    $region2: #{tpu_custom_call.1} parent=1 // pred_check
      _
    $region3: #{tpu_custom_call.1} parent=1 // pred_check_branch
      %14 = sbr.rel (0) target = $region5
    $region4: #{tpu_custom_call.1} parent=1 // pred_region
      %s16 = ssub.s32 512, 512
      %17 = vsyncadd [#allocation4], %s16
      %s18 = sshll.u32 [#allocation3], 4
      %s19 = int_to_ptr.vmem [resolvable:$true] %s18
      %24 = dma.hbm_to_vmem [thread:$0]  %s0, 512, %s19, [#allocation4], 128, 128, 8
    $region5: #{tpu_custom_call.1} parent=1 // pred_fallthru
      _
    // Predicated region
    $region6: #{tpu_custom_call.1} parent=1 // pred_check
      _
    $region7: #{tpu_custom_call.1} parent=1 // pred_check_branch
      %26 = sbr.rel (0) target = $region9
    $region8: #{tpu_custom_call.1} parent=1 // pred_region
      %s28 = ssub.s32 18432, 18432
      %29 = vsyncadd [#allocation7], %s28
      %s30 = sshll.u32 [#allocation6], 4
      %s31 = int_to_ptr.vmem [resolvable:$true] %s30
      %36 = dma.hbm_to_vmem [thread:$0]  %s1, 18432, %s31, [#allocation7], 128, 128, 8
    $region9: #{tpu_custom_call.1} parent=1 // pred_fallthru
      _
    // Predicated region
    $region10: #{tpu_custom_call.1} parent=1 // pred_check
      _
    $region11: #{tpu_custom_call.1} parent=1 // pred_check_branch
      %38 = sbr.rel (0) target = $region13
    $region12: #{tpu_custom_call.1} parent=1 // pred_region
      %s40 = ssub.s32 2048, 2048
      %41 = vsyncadd [#allocation7], %s40
      %s42 = sshll.u32 [#allocation8], 4
      %s43 = int_to_ptr.vmem [resolvable:$true] %s42
      %48 = dma.hbm_to_vmem [thread:$0]  %s2, 2048, %s43, [#allocation7], 128, 128, 8
    $region13: #{tpu_custom_call.1} parent=1 // pred_fallthru
      _
    // Predicated region
    $region14: #{tpu_custom_call.1} parent=1 // pred_check
      _
    $region15: #{tpu_custom_call.1} parent=1 // pred_check_branch
      %50 = sbr.rel (0) target = $region17
    $region16: #{tpu_custom_call.1} parent=1 // pred_region
      _
    $region17: #{tpu_custom_call.1} parent=1 // pred_fallthru
      _
    // Predicated region
    $region18: #{tpu_custom_call.1} parent=1 // pred_check
      _
    $region19: #{tpu_custom_call.1} parent=1 // pred_check_branch
      %52 = sbr.rel (0) target = $region21
    $region20: #{tpu_custom_call.1} parent=1 // pred_region
      _
    $region21: #{tpu_custom_call.1} parent=1 // pred_fallthru
      _
    // Predicated region
    $region22: #{tpu_custom_call.1} parent=1 // pred_check
      _
    $region23: #{tpu_custom_call.1} parent=1 // pred_check_branch
      %54 = sbr.rel (0) target = $region25
    $region24: #{tpu_custom_call.1} parent=1 // pred_region
      %55 = dma.done [#allocation4], 512
    $region25: #{tpu_custom_call.1} parent=1 // pred_fallthru
      _
    // Predicated region
    $region26: #{tpu_custom_call.1} parent=1 // pred_check
      _
    $region27: #{tpu_custom_call.1} parent=1 // pred_check_branch
      %57 = sbr.rel (0) target = $region29
    $region28: #{tpu_custom_call.1} parent=1 // pred_region
      %58 = dma.done [#allocation7], 18432
    $region29: #{tpu_custom_call.1} parent=1 // pred_fallthru
      _
    // Predicated region
    $region30: #{tpu_custom_call.1} parent=1 // pred_check
      _
    $region31: #{tpu_custom_call.1} parent=1 // pred_check_branch
      %60 = sbr.rel (0) target = $region33
    $region32: #{tpu_custom_call.1} parent=1 // pred_region
      %61 = dma.done [#allocation7], 2048
    $region33: #{tpu_custom_call.1} parent=1 // pred_fallthru
      _
    %62 = vst [vmem:[#allocation2 + $0x7] sm:$0xff] 0.0
    %63 = vst [vmem:[#allocation2 + $0xf] sm:$0xff] 0.0
    %64 = vst [vmem:[#allocation2 + $0x17] sm:$0x3] 0.0
    %65 = vst [vmem:[#allocation2 + $0x27] sm:$0xff] 0.0
    %66 = vst [vmem:[#allocation2 + $0x2f] sm:$0xff] 0.0
    %67 = vst [vmem:[#allocation2 + $0x37] sm:$0x3] 0.0
    %v68 = vld [vmem:[#allocation3] sm:$0xff]
    %v69 = vld [vmem:[#allocation3 + $0x8] sm:$0xff]
    %v70 = vld [vmem:[#allocation3 + $0x10] sm:$0xff]
    %v71 = vld [vmem:[#allocation3 + $0x18] sm:$0xff]
    %vm72 = vcmask 523264
    %73 = vst.msk [vmem:[#allocation2 + $0x8] sm:$0xff] %vm72, %v68
    %74 = vst.msk [vmem:[#allocation2 + $0x10] sm:$0xff] %vm72, %v69
    %75 = vst.msk [vmem:[#allocation2 + $0x28] sm:$0xff] %vm72, %v70
    %76 = vst.msk [vmem:[#allocation2 + $0x30] sm:$0xff] %vm72, %v71
    %v77 = vld [vmem:[#allocation8] sm:$0xff]
    %v78 = vld [vmem:[#allocation8 + $0x8] sm:$0xff]
    %v79 = vld [vmem:[#allocation8 + $0x10] sm:$0xff]
    %v80 = vld [vmem:[#allocation8 + $0x18] sm:$0xff]
    %v81 = vld [vmem:[#allocation8 + $0x20] sm:$0xff]
    %v82 = vld [vmem:[#allocation8 + $0x28] sm:$0xff]
    %v83 = vld [vmem:[#allocation8 + $0x30] sm:$0xff]
    %v84 = vld [vmem:[#allocation8 + $0x38] sm:$0xff]
    %v85 = vld [vmem:[#allocation8 + $0x40] sm:$0xff]
    %v86 = vld [vmem:[#allocation8 + $0x48] sm:$0xff]
    %v87 = vld [vmem:[#allocation8 + $0x50] sm:$0xff]
    %v88 = vld [vmem:[#allocation8 + $0x58] sm:$0xff]
    %v89 = vld [vmem:[#allocation8 + $0x60] sm:$0xff]
    %v90 = vld [vmem:[#allocation8 + $0x68] sm:$0xff]
    %v91 = vld [vmem:[#allocation8 + $0x70] sm:$0xff]
    %v92 = vld [vmem:[#allocation8 + $0x78] sm:$0xff]
    %v93 = vld [vmem:[#allocation2 + $0x7] sm:$0xff]
    %v94 = vld [vmem:[#allocation2 + $0xf] sm:$0xff]
    %v95 = vld [vmem:[#allocation2 + $0x27] sm:$0xff]
    %v96 = vld [vmem:[#allocation2 + $0x2f] sm:$0xff]
    %v97 = vld [vmem:[#allocation2 + $0x8] sm:$0xff]
    %v98 = vld [vmem:[#allocation2 + $0x10] sm:$0xff]
    %v99 = vld [vmem:[#allocation2 + $0x28] sm:$0xff]
    %v100 = vld [vmem:[#allocation2 + $0x30] sm:$0xff]
    %v101 = vld [vmem:[#allocation2 + $0x9] sm:$0xff]
    %v102 = vld [vmem:[#allocation2 + $0x11] sm:$0xff]
    %v103 = vld [vmem:[#allocation2 + $0x29] sm:$0xff]
    %v104 = vld [vmem:[#allocation2 + $0x31] sm:$0xff]
    %v105 = vld [vmem:[#allocation6] sm:$0xff]
    %v106 = vld [vmem:[#allocation6 + $0x8] sm:$0xff]
    %v107 = vld [vmem:[#allocation6 + $0x10] sm:$0xff]
    %v108 = vld [vmem:[#allocation6 + $0x18] sm:$0xff]
    %v109 = vld [vmem:[#allocation6 + $0x20] sm:$0xff]
    %v110 = vld [vmem:[#allocation6 + $0x28] sm:$0xff]
    %v111 = vld [vmem:[#allocation6 + $0x30] sm:$0xff]
    %v112 = vld [vmem:[#allocation6 + $0x38] sm:$0xff]
    %v113 = vld [vmem:[#allocation6 + $0x40] sm:$0xff]
    %v114 = vld [vmem:[#allocation6 + $0x48] sm:$0xff]
    %v115 = vld [vmem:[#allocation6 + $0x50] sm:$0xff]
    %v116 = vld [vmem:[#allocation6 + $0x58] sm:$0xff]
    %v117 = vld [vmem:[#allocation6 + $0x60] sm:$0xff]
    %v118 = vld [vmem:[#allocation6 + $0x68] sm:$0xff]
    %v119 = vld [vmem:[#allocation6 + $0x70] sm:$0xff]
    %v120 = vld [vmem:[#allocation6 + $0x78] sm:$0xff]
    %v121 = vld [vmem:[#allocation6 + $0x80] sm:$0xff]
    %v122 = vld [vmem:[#allocation6 + $0x88] sm:$0xff]
    %v123 = vld [vmem:[#allocation6 + $0x90] sm:$0xff]
    %v124 = vld [vmem:[#allocation6 + $0x98] sm:$0xff]
    %v125 = vld [vmem:[#allocation6 + $0xa0] sm:$0xff]
    %v126 = vld [vmem:[#allocation6 + $0xa8] sm:$0xff]
    %v127 = vld [vmem:[#allocation6 + $0xb0] sm:$0xff]
    %v128 = vld [vmem:[#allocation6 + $0xb8] sm:$0xff]
    %v129 = vld [vmem:[#allocation6 + $0xc0] sm:$0xff]
    %v130 = vld [vmem:[#allocation6 + $0xc8] sm:$0xff]
    %v131 = vld [vmem:[#allocation6 + $0xd0] sm:$0xff]
    %v132 = vld [vmem:[#allocation6 + $0xd8] sm:$0xff]
    %v133 = vld [vmem:[#allocation6 + $0xe0] sm:$0xff]
    %v134 = vld [vmem:[#allocation6 + $0xe8] sm:$0xff]
    %v135 = vld [vmem:[#allocation6 + $0xf0] sm:$0xff]
    %v136 = vld [vmem:[#allocation6 + $0xf8] sm:$0xff]
    %v137 = vld [vmem:[#allocation6 + $0x100] sm:$0xff]
    %v138 = vld [vmem:[#allocation6 + $0x108] sm:$0xff]
    %v139 = vld [vmem:[#allocation6 + $0x110] sm:$0xff]
    %v140 = vld [vmem:[#allocation6 + $0x118] sm:$0xff]
    %v141 = vld [vmem:[#allocation6 + $0x120] sm:$0xff]
    %v142 = vld [vmem:[#allocation6 + $0x128] sm:$0xff]
    %v143 = vld [vmem:[#allocation6 + $0x130] sm:$0xff]
    %v144 = vld [vmem:[#allocation6 + $0x138] sm:$0xff]
    %v145 = vld [vmem:[#allocation6 + $0x140] sm:$0xff]
    %v146 = vld [vmem:[#allocation6 + $0x148] sm:$0xff]
    %v147 = vld [vmem:[#allocation6 + $0x150] sm:$0xff]
    %v148 = vld [vmem:[#allocation6 + $0x158] sm:$0xff]
    %v149 = vld [vmem:[#allocation6 + $0x160] sm:$0xff]
    %v150 = vld [vmem:[#allocation6 + $0x168] sm:$0xff]
    %v151 = vld [vmem:[#allocation6 + $0x170] sm:$0xff]
    %v152 = vld [vmem:[#allocation6 + $0x178] sm:$0xff]
    %153 = vmatprep.subr.mxu0 0.0
    %154 = vmatpush1.msra.mxu0 %v105
    %155 = vmatprep.subr.mxu0 0.0
    %156 = vmatpush1.msra.mxu0 %v106
    %157 = vmatprep.subr.mxu0 0.0
    %158 = vmatpush1.msra.mxu0 %v107
    %159 = vmatprep.subr.mxu0 0.0
    %160 = vmatpush1.msra.mxu0 %v108
    %161 = vmatprep.subr.mxu0 0.0
    %162 = vmatpush1.msra.mxu0 %v109
    %163 = vmatprep.subr.mxu0 0.0
    %164 = vmatpush1.msra.mxu0 %v110
    %165 = vmatprep.subr.mxu0 0.0
    %166 = vmatpush1.msra.mxu0 %v111
    %167 = vmatprep.subr.mxu0 0.0
    %168 = vmatpush1.msra.mxu0 %v112
    %169 = vmatprep.subr.mxu0 0.0
    %170 = vmatpush1.msra.mxu0 %v113
    %171 = vmatprep.subr.mxu0 0.0
    %172 = vmatpush1.msra.mxu0 %v114
    %173 = vmatprep.subr.mxu0 0.0
    %174 = vmatpush1.msra.mxu0 %v115
    %175 = vmatprep.subr.mxu0 0.0
    %176 = vmatpush1.msra.mxu0 %v116
    %177 = vmatprep.subr.mxu0 0.0
    %178 = vmatpush1.msra.mxu0 %v117
    %179 = vmatprep.subr.mxu0 0.0
    %180 = vmatpush1.msra.mxu0 %v118
    %181 = vmatprep.subr.mxu0 0.0
    %182 = vmatpush1.msra.mxu0 %v119
    %183 = vmatprep.subr.mxu0 0.0
    %184 = vmatpush1.msra.mxu0 %v120
    %185 = vmatprep.subr.mxu0 0.0
    %186 = vmatpush1.msra.mxu0 %v121
    %187 = vmatprep.subr.mxu0 0.0
    %188 = vmatpush1.msra.mxu0 %v122
    %189 = vmatprep.subr.mxu0 0.0
    %190 = vmatpush1.msra.mxu0 %v123
    %191 = vmatprep.subr.mxu0 0.0
    %192 = vmatpush1.msra.mxu0 %v124
    %193 = vmatprep.subr.mxu0 0.0
    %194 = vmatpush1.msra.mxu0 %v125
    %195 = vmatprep.subr.mxu0 0.0
    %196 = vmatpush1.msra.mxu0 %v126
    %197 = vmatprep.subr.mxu0 0.0
    %198 = vmatpush1.msra.mxu0 %v127
    %199 = vmatprep.subr.mxu0 0.0
    %200 = vmatpush1.msra.mxu0 %v128
    %201 = vmatprep.subr.mxu0 0.0
    %202 = vmatpush1.msra.mxu0 %v129
    %203 = vmatprep.subr.mxu0 0.0
    %204 = vmatpush1.msra.mxu0 %v130
    %205 = vmatprep.subr.mxu0 0.0
    %206 = vmatpush1.msra.mxu0 %v131
    %207 = vmatprep.subr.mxu0 0.0
    %208 = vmatpush1.msra.mxu0 %v132
    %209 = vmatprep.subr.mxu0 0.0
    %210 = vmatpush1.msra.mxu0 %v133
    %211 = vmatprep.subr.mxu0 0.0
    %212 = vmatpush1.msra.mxu0 %v134
    %213 = vmatprep.subr.mxu0 0.0
    %214 = vmatpush1.msra.mxu0 %v135
    %215 = vmatprep.subr.mxu0 0.0
    %216 = vmatpush1.msra.mxu0 %v136
    %217 = vmatprep.mubr.f32.mxu0 %v97
    %218 = vmatmul.mubr.f32.gmra.mrb[0].mxu0 %v93
    %v219 = vpop.f32.mrb[0].mxu0
    %v220 = vadd.f32 0.0, %v219
    %v221 = vpop.f32.mrb[0].mxu0
    %222 = vmatprep.mubr.f32.mxu0 %v98
    %223 = vmatmul.mubr.f32.gmra.mrb[0].mxu0 %v94
    %v224 = vpop.f32.mrb[0].mxu0
    %v225 = vadd.f32 0.0, %v224
    %v226 = vpop.f32.mrb[0].mxu0
    %227 = vmatprep.mubr.f32.mxu0 %v99
    %228 = vmatmul.mubr.f32.gmra.mrb[0].mxu0 %v95
    %v229 = vpop.f32.mrb[0].mxu0
    %v230 = vadd.f32 0.0, %v229
    %v231 = vpop.f32.mrb[0].mxu0
    %232 = vmatprep.mubr.f32.mxu0 %v100
    %233 = vmatmul.mubr.f32.gmra.mrb[0].mxu0 %v96
    %v234 = vpop.f32.mrb[0].mxu0
    %v235 = vadd.f32 0.0, %v234
    %v236 = vpop.f32.mrb[0].mxu0
    %237 = vdwg.mxu0
    %238 = vmatprep.subr.mxu0 0.0
    %239 = vmatpush1.msra.mxu0 %v137
    %240 = vmatprep.subr.mxu0 0.0
    %241 = vmatpush1.msra.mxu0 %v138
    %242 = vmatprep.subr.mxu0 0.0
    %243 = vmatpush1.msra.mxu0 %v139
    %244 = vmatprep.subr.mxu0 0.0
    %245 = vmatpush1.msra.mxu0 %v140
    %246 = vmatprep.subr.mxu0 0.0
    %247 = vmatpush1.msra.mxu0 %v141
    %248 = vmatprep.subr.mxu0 0.0
    %249 = vmatpush1.msra.mxu0 %v142
    %250 = vmatprep.subr.mxu0 0.0
    %251 = vmatpush1.msra.mxu0 %v143
    %252 = vmatprep.subr.mxu0 0.0
    %253 = vmatpush1.msra.mxu0 %v144
    %254 = vmatprep.subr.mxu0 0.0
    %255 = vmatpush1.msra.mxu0 %v145
    %256 = vmatprep.subr.mxu0 0.0
    %257 = vmatpush1.msra.mxu0 %v146
    %258 = vmatprep.subr.mxu0 0.0
    %259 = vmatpush1.msra.mxu0 %v147
    %260 = vmatprep.subr.mxu0 0.0
    %261 = vmatpush1.msra.mxu0 %v148
    %262 = vmatprep.subr.mxu0 0.0
    %263 = vmatpush1.msra.mxu0 %v149
    %264 = vmatprep.subr.mxu0 0.0
    %265 = vmatpush1.msra.mxu0 %v150
    %266 = vmatprep.subr.mxu0 0.0
    %267 = vmatpush1.msra.mxu0 %v151
    %268 = vmatprep.subr.mxu0 0.0
    %269 = vmatpush1.msra.mxu0 %v152
    %270 = vmatprep.subr.mxu0 0.0
    %271 = vmatpush1.msra.mxu0 0.0
    %272 = vmatprep.subr.mxu0 0.0
    %273 = vmatpush1.msra.mxu0 0.0
    %274 = vmatprep.subr.mxu0 0.0
    %275 = vmatpush1.msra.mxu0 0.0
    %276 = vmatprep.subr.mxu0 0.0
    %277 = vmatpush1.msra.mxu0 0.0
    %278 = vmatprep.subr.mxu0 0.0
    %279 = vmatpush1.msra.mxu0 0.0
    %280 = vmatprep.subr.mxu0 0.0
    %281 = vmatpush1.msra.mxu0 0.0
    %282 = vmatprep.subr.mxu0 0.0
    %283 = vmatpush1.msra.mxu0 0.0
    %284 = vmatprep.subr.mxu0 0.0
    %285 = vmatpush1.msra.mxu0 0.0
    %286 = vmatprep.subr.mxu0 0.0
    %287 = vmatpush1.msra.mxu0 0.0
    %288 = vmatprep.subr.mxu0 0.0
    %289 = vmatpush1.msra.mxu0 0.0
    %290 = vmatprep.subr.mxu0 0.0
    %291 = vmatpush1.msra.mxu0 0.0
    %292 = vmatprep.subr.mxu0 0.0
    %293 = vmatpush1.msra.mxu0 0.0
    %294 = vmatprep.subr.mxu0 0.0
    %295 = vmatpush1.msra.mxu0 0.0
    %296 = vmatprep.subr.mxu0 0.0
    %297 = vmatpush1.msra.mxu0 0.0
    %298 = vmatprep.subr.mxu0 0.0
    %299 = vmatpush1.msra.mxu0 0.0
    %300 = vmatprep.subr.mxu0 0.0
    %301 = vmatpush1.msra.mxu0 0.0
    %302 = vmatprep.mubr.f32.mxu0 0.0
    %303 = vmatmul.mubr.f32.gmra.mrb[0].mxu0 %v101
    %v304 = vpop.f32.mrb[0].mxu0
    %v305 = vadd.f32 %v220, %v304
    %v306 = vpop.f32.mrb[0].mxu0
    %307 = vmatprep.mubr.f32.mxu0 0.0
    %308 = vmatmul.mubr.f32.gmra.mrb[0].mxu0 %v102
    %v309 = vpop.f32.mrb[0].mxu0
    %v310 = vadd.f32 %v225, %v309
    %v311 = vpop.f32.mrb[0].mxu0
    %312 = vmatprep.mubr.f32.mxu0 0.0
    %313 = vmatmul.mubr.f32.gmra.mrb[0].mxu0 %v103
    %v314 = vpop.f32.mrb[0].mxu0
    %v315 = vadd.f32 %v230, %v314
    %v316 = vpop.f32.mrb[0].mxu0
    %317 = vmatprep.mubr.f32.mxu0 0.0
    %318 = vmatmul.mubr.f32.gmra.mrb[0].mxu0 %v104
    %v319 = vpop.f32.mrb[0].mxu0
    %v320 = vadd.f32 %v235, %v319
    %v321 = vpop.f32.mrb[0].mxu0
    %322 = vdwg.mxu0
    %v323 = vadd.f32 %v305, %v310
    %v324 = vadd.f32 %v323, %v315
    %v325 = vadd.f32 %v324, %v320
    %v326 = vrot.slane %v325, 4
    %v327 = vadd.f32 %v325, %v326
    %v328 = vrot.slane %v327, 2
    %v329 = vadd.f32 %v327, %v328
    %v330 = vrot.slane %v329, 1
    %v331 = vadd.f32 %v329, %v330
    %v332 = vmul.f32 %v305, %v305
    %v333 = vmul.f32 %v310, %v310
    %v334 = vmul.f32 %v315, %v315
    %v335 = vmul.f32 %v320, %v320
    %v336 = vadd.f32 %v332, %v333
    %v337 = vadd.f32 %v336, %v334
    %v338 = vadd.f32 %v337, %v335
    %v339 = vrot.slane %v338, 4
    %v340 = vadd.f32 %v338, %v339
    %v341 = vrot.slane %v340, 2
    %v342 = vadd.f32 %v340, %v341
    %v343 = vrot.slane %v342, 1
    %v344 = vadd.f32 %v342, %v343
    %vm345 = vcmask 1040384
    %v346 = vsel %vm345, %v331, %v344
    %347 = vmatprep.subr.mxu0 0.0
    %348 = vmatpush1.msra.mxu0 %v77
    %349 = vmatprep.subr.mxu0 0.0
    %350 = vmatpush1.msra.mxu0 %v78
    %351 = vmatprep.subr.mxu0 0.0
    %352 = vmatpush1.msra.mxu0 %v79
    %353 = vmatprep.subr.mxu0 0.0
    %354 = vmatpush1.msra.mxu0 %v80
    %355 = vmatprep.subr.mxu0 0.0
    %356 = vmatpush1.msra.mxu0 %v81
    %357 = vmatprep.subr.mxu0 0.0
    %358 = vmatpush1.msra.mxu0 %v82
    %359 = vmatprep.subr.mxu0 0.0
    %360 = vmatpush1.msra.mxu0 %v83
    %361 = vmatprep.subr.mxu0 0.0
    %362 = vmatpush1.msra.mxu0 %v84
    %363 = vmatprep.subr.mxu0 0.0
    %364 = vmatpush1.msra.mxu0 %v85
    %365 = vmatprep.subr.mxu0 0.0
    %366 = vmatpush1.msra.mxu0 %v86
    %367 = vmatprep.subr.mxu0 0.0
    %368 = vmatpush1.msra.mxu0 %v87
    %369 = vmatprep.subr.mxu0 0.0
    %370 = vmatpush1.msra.mxu0 %v88
    %371 = vmatprep.subr.mxu0 0.0
    %372 = vmatpush1.msra.mxu0 %v89
    %373 = vmatprep.subr.mxu0 0.0
    %374 = vmatpush1.msra.mxu0 %v90
    %375 = vmatprep.subr.mxu0 0.0
    %376 = vmatpush1.msra.mxu0 %v91
    %377 = vmatprep.subr.mxu0 0.0
    %378 = vmatpush1.msra.mxu0 %v92
    %379 = vmatprep.subr.mxu0 0.0
    %380 = vmatpush1.msra.mxu0 0.0
    %381 = vmatprep.subr.mxu0 0.0
    %382 = vmatpush1.msra.mxu0 0.0
    %383 = vmatprep.subr.mxu0 0.0
    %384 = vmatpush1.msra.mxu0 0.0
    %385 = vmatprep.subr.mxu0 0.0
    %386 = vmatpush1.msra.mxu0 0.0
    %387 = vmatprep.subr.mxu0 0.0
    %388 = vmatpush1.msra.mxu0 0.0
    %389 = vmatprep.subr.mxu0 0.0
    %390 = vmatpush1.msra.mxu0 0.0
    %391 = vmatprep.subr.mxu0 0.0
    %392 = vmatpush1.msra.mxu0 0.0
    %393 = vmatprep.subr.mxu0 0.0
    %394 = vmatpush1.msra.mxu0 0.0
    %395 = vmatprep.subr.mxu0 0.0
    %396 = vmatpush1.msra.mxu0 0.0
    %397 = vmatprep.subr.mxu0 0.0
    %398 = vmatpush1.msra.mxu0 0.0
    %399 = vmatprep.subr.mxu0 0.0
    %400 = vmatpush1.msra.mxu0 0.0
    %401 = vmatprep.subr.mxu0 0.0
    %402 = vmatpush1.msra.mxu0 0.0
    %403 = vmatprep.subr.mxu0 0.0
    %404 = vmatpush1.msra.mxu0 0.0
    %405 = vmatprep.subr.mxu0 0.0
    %406 = vmatpush1.msra.mxu0 0.0
    %407 = vmatprep.subr.mxu0 0.0
    %408 = vmatpush1.msra.mxu0 0.0
    %409 = vmatprep.subr.mxu0 0.0
    %410 = vmatpush1.msra.mxu0 0.0
    %411 = vmatprep.mubr.f32.mxu0 0.0
    %412 = vmatmul.mubr.f32.gmra.mrb[0].mxu0 %v346
    %v413 = vpop.f32.mrb[0].mxu0
    %v414 = vadd.f32 0.0, %v413
    %v415 = vpop.f32.mrb[0].mxu0
    %416 = vdwg.mxu0
    %v417 = vmul.f32 %v414, %v414
    %v419 = vrot.slane %v417, 7
    %v421 = vsub.f32 %v414, %v419
    %v422 = vmax.f32 %v421, 0.0
    %v423 = vld [vmem:[%s3] sm:$0x1]
    %v424 = vadd.f32 %v422, 1e-05
    %v425 = vrsqrt.pop %v424
    %v427 = vrot.slane %v425, 1
    %v429 = vmul.f32 %v423, %v427
    %v430 = vld [vmem:[%s4] sm:$0x1]
    %v431 = vmul.f32 %v429, %v414
    %v432 = vsub.f32 %v430, %v431
    %v433 = vlaneseq
    %v434 = vshrl.u32 %v433, 7
    %v435 = vsub.s32 0, %v434
    %v436 = vrot.slane %v429, %v435
    %v437 = vmul.f32 %v305, %v436
    %v438 = vmul.f32 %v310, %v436
    %v439 = vmul.f32 %v315, %v436
    %v440 = vmul.f32 %v320, %v436
    %v441 = vlaneseq
    %v442 = vshrl.u32 %v441, 7
    %v443 = vsub.s32 0, %v442
    %v444 = vrot.slane %v432, %v443
    %v445 = vadd.f32 %v437, %v444
    %v446 = vadd.f32 %v438, %v444
    %v447 = vadd.f32 %v439, %v444
    %v448 = vadd.f32 %v440, %v444
    %v449 = vmax.f32 %v445, 0.0
    %v450 = vmax.f32 %v446, 0.0
    %v451 = vmax.f32 %v447, 0.0
    %v452 = vmax.f32 %v448, 0.0
    %453 = vst [vmem:[#allocation2 + $0x8] sm:$0xff] %v449
    %454 = vst [vmem:[#allocation2 + $0x10] sm:$0xff] %v450
    %455 = vst [vmem:[#allocation2 + $0x28] sm:$0xff] %v451
    %456 = vst [vmem:[#allocation2 + $0x30] sm:$0xff] %v452
    %v457 = vld [vmem:[#allocation2 + $0x7] sm:$0xff]
    %v458 = vld [vmem:[#allocation2 + $0xf] sm:$0xff]
    %v459 = vld [vmem:[#allocation2 + $0x27] sm:$0xff]
    %v460 = vld [vmem:[#allocation2 + $0x2f] sm:$0xff]
    %v461 = vld [vmem:[#allocation2 + $0x8] sm:$0xff]
    %v462 = vld [vmem:[#allocation2 + $0x10] sm:$0xff]
    %v463 = vld [vmem:[#allocation2 + $0x28] sm:$0xff]
    %v464 = vld [vmem:[#allocation2 + $0x30] sm:$0xff]
    %v465 = vld [vmem:[#allocation2 + $0x9] sm:$0xff]
    %v466 = vld [vmem:[#allocation2 + $0x11] sm:$0xff]
    %v467 = vld [vmem:[#allocation2 + $0x29] sm:$0xff]
    %v468 = vld [vmem:[#allocation2 + $0x31] sm:$0xff]
    %s469 = scalar_lea.vmem [#allocation6], 384
    %v470 = vld [vmem:[%s469] sm:$0xff]
    %v471 = vld [vmem:[%s469 + $0x8] sm:$0xff]
    %v472 = vld [vmem:[%s469 + $0x10] sm:$0xff]
    %v473 = vld [vmem:[%s469 + $0x18] sm:$0xff]
    %v474 = vld [vmem:[%s469 + $0x20] sm:$0xff]
    %v475 = vld [vmem:[%s469 + $0x28] sm:$0xff]
    %v476 = vld [vmem:[%s469 + $0x30] sm:$0xff]
    %v477 = vld [vmem:[%s469 + $0x38] sm:$0xff]
    %v478 = vld [vmem:[%s469 + $0x40] sm:$0xff]
    %v479 = vld [vmem:[%s469 + $0x48] sm:$0xff]
    %v480 = vld [vmem:[%s469 + $0x50] sm:$0xff]
    %v481 = vld [vmem:[%s469 + $0x58] sm:$0xff]
    %v482 = vld [vmem:[%s469 + $0x60] sm:$0xff]
    %v483 = vld [vmem:[%s469 + $0x68] sm:$0xff]
    %v484 = vld [vmem:[%s469 + $0x70] sm:$0xff]
    %v485 = vld [vmem:[%s469 + $0x78] sm:$0xff]
    %v486 = vld [vmem:[%s469 + $0x80] sm:$0xff]
    %v487 = vld [vmem:[%s469 + $0x88] sm:$0xff]
    %v488 = vld [vmem:[%s469 + $0x90] sm:$0xff]
    %v489 = vld [vmem:[%s469 + $0x98] sm:$0xff]
    %v490 = vld [vmem:[%s469 + $0xa0] sm:$0xff]
    %v491 = vld [vmem:[%s469 + $0xa8] sm:$0xff]
    %v492 = vld [vmem:[%s469 + $0xb0] sm:$0xff]
    %v493 = vld [vmem:[%s469 + $0xb8] sm:$0xff]
    %v494 = vld [vmem:[%s469 + $0xc0] sm:$0xff]
    %v495 = vld [vmem:[%s469 + $0xc8] sm:$0xff]
    %v496 = vld [vmem:[%s469 + $0xd0] sm:$0xff]
    %v497 = vld [vmem:[%s469 + $0xd8] sm:$0xff]
    %v498 = vld [vmem:[%s469 + $0xe0] sm:$0xff]
    %v499 = vld [vmem:[%s469 + $0xe8] sm:$0xff]
    %v500 = vld [vmem:[%s469 + $0xf0] sm:$0xff]
    %v501 = vld [vmem:[%s469 + $0xf8] sm:$0xff]
    %v502 = vld [vmem:[%s469 + $0x100] sm:$0xff]
    %v503 = vld [vmem:[%s469 + $0x108] sm:$0xff]
    %v504 = vld [vmem:[%s469 + $0x110] sm:$0xff]
    %v505 = vld [vmem:[%s469 + $0x118] sm:$0xff]
    %v506 = vld [vmem:[%s469 + $0x120] sm:$0xff]
    %v507 = vld [vmem:[%s469 + $0x128] sm:$0xff]
    %v508 = vld [vmem:[%s469 + $0x130] sm:$0xff]
    %v509 = vld [vmem:[%s469 + $0x138] sm:$0xff]
    %v510 = vld [vmem:[%s469 + $0x140] sm:$0xff]
    %v511 = vld [vmem:[%s469 + $0x148] sm:$0xff]
    %v512 = vld [vmem:[%s469 + $0x150] sm:$0xff]
    %v513 = vld [vmem:[%s469 + $0x158] sm:$0xff]
    %v514 = vld [vmem:[%s469 + $0x160] sm:$0xff]
    %v515 = vld [vmem:[%s469 + $0x168] sm:$0xff]
    %v516 = vld [vmem:[%s469 + $0x170] sm:$0xff]
    %v517 = vld [vmem:[%s469 + $0x178] sm:$0xff]
    %518 = vmatprep.subr.mxu0 0.0
    %519 = vmatpush1.msra.mxu0 %v470
    %520 = vmatprep.subr.mxu0 0.0
    %521 = vmatpush1.msra.mxu0 %v471
    %522 = vmatprep.subr.mxu0 0.0
    %523 = vmatpush1.msra.mxu0 %v472
    %524 = vmatprep.subr.mxu0 0.0
    %525 = vmatpush1.msra.mxu0 %v473
    %526 = vmatprep.subr.mxu0 0.0
    %527 = vmatpush1.msra.mxu0 %v474
    %528 = vmatprep.subr.mxu0 0.0
    %529 = vmatpush1.msra.mxu0 %v475
    %530 = vmatprep.subr.mxu0 0.0
    %531 = vmatpush1.msra.mxu0 %v476
    %532 = vmatprep.subr.mxu0 0.0
    %533 = vmatpush1.msra.mxu0 %v477
    %534 = vmatprep.subr.mxu0 0.0
    %535 = vmatpush1.msra.mxu0 %v478
    %536 = vmatprep.subr.mxu0 0.0
    %537 = vmatpush1.msra.mxu0 %v479
    %538 = vmatprep.subr.mxu0 0.0
    %539 = vmatpush1.msra.mxu0 %v480
    %540 = vmatprep.subr.mxu0 0.0
    %541 = vmatpush1.msra.mxu0 %v481
    %542 = vmatprep.subr.mxu0 0.0
    %543 = vmatpush1.msra.mxu0 %v482
    %544 = vmatprep.subr.mxu0 0.0
    %545 = vmatpush1.msra.mxu0 %v483
    %546 = vmatprep.subr.mxu0 0.0
    %547 = vmatpush1.msra.mxu0 %v484
    %548 = vmatprep.subr.mxu0 0.0
    %549 = vmatpush1.msra.mxu0 %v485
    %550 = vmatprep.subr.mxu0 0.0
    %551 = vmatpush1.msra.mxu0 %v486
    %552 = vmatprep.subr.mxu0 0.0
    %553 = vmatpush1.msra.mxu0 %v487
    %554 = vmatprep.subr.mxu0 0.0
    %555 = vmatpush1.msra.mxu0 %v488
    %556 = vmatprep.subr.mxu0 0.0
    %557 = vmatpush1.msra.mxu0 %v489
    %558 = vmatprep.subr.mxu0 0.0
    %559 = vmatpush1.msra.mxu0 %v490
    %560 = vmatprep.subr.mxu0 0.0
    %561 = vmatpush1.msra.mxu0 %v491
    %562 = vmatprep.subr.mxu0 0.0
    %563 = vmatpush1.msra.mxu0 %v492
    %564 = vmatprep.subr.mxu0 0.0
    %565 = vmatpush1.msra.mxu0 %v493
    %566 = vmatprep.subr.mxu0 0.0
    %567 = vmatpush1.msra.mxu0 %v494
    %568 = vmatprep.subr.mxu0 0.0
    %569 = vmatpush1.msra.mxu0 %v495
    %570 = vmatprep.subr.mxu0 0.0
    %571 = vmatpush1.msra.mxu0 %v496
    %572 = vmatprep.subr.mxu0 0.0
    %573 = vmatpush1.msra.mxu0 %v497
    %574 = vmatprep.subr.mxu0 0.0
    %575 = vmatpush1.msra.mxu0 %v498
    %576 = vmatprep.subr.mxu0 0.0
    %577 = vmatpush1.msra.mxu0 %v499
    %578 = vmatprep.subr.mxu0 0.0
    %579 = vmatpush1.msra.mxu0 %v500
    %580 = vmatprep.subr.mxu0 0.0
    %581 = vmatpush1.msra.mxu0 %v501
    %582 = vmatprep.mubr.f32.mxu0 %v461
    %583 = vmatmul.mubr.f32.gmra.mrb[0].mxu0 %v457
    %v584 = vpop.f32.mrb[0].mxu0
    %v585 = vadd.f32 0.0, %v584
    %v586 = vpop.f32.mrb[0].mxu0
    %587 = vmatprep.mubr.f32.mxu0 %v462
    %588 = vmatmul.mubr.f32.gmra.mrb[0].mxu0 %v458
    %v589 = vpop.f32.mrb[0].mxu0
    %v590 = vadd.f32 0.0, %v589
    %v591 = vpop.f32.mrb[0].mxu0
    %592 = vmatprep.mubr.f32.mxu0 %v463
    %593 = vmatmul.mubr.f32.gmra.mrb[0].mxu0 %v459
    %v594 = vpop.f32.mrb[0].mxu0
    %v595 = vadd.f32 0.0, %v594
    %v596 = vpop.f32.mrb[0].mxu0
    %597 = vmatprep.mubr.f32.mxu0 %v464
    %598 = vmatmul.mubr.f32.gmra.mrb[0].mxu0 %v460
    %v599 = vpop.f32.mrb[0].mxu0
    %v600 = vadd.f32 0.0, %v599
    %v601 = vpop.f32.mrb[0].mxu0
    %602 = vdwg.mxu0
    %603 = vmatprep.subr.mxu0 0.0
    %604 = vmatpush1.msra.mxu0 %v502
    %605 = vmatprep.subr.mxu0 0.0
    %606 = vmatpush1.msra.mxu0 %v503
    %607 = vmatprep.subr.mxu0 0.0
    %608 = vmatpush1.msra.mxu0 %v504
    %609 = vmatprep.subr.mxu0 0.0
    %610 = vmatpush1.msra.mxu0 %v505
    %611 = vmatprep.subr.mxu0 0.0
    %612 = vmatpush1.msra.mxu0 %v506
    %613 = vmatprep.subr.mxu0 0.0
    %614 = vmatpush1.msra.mxu0 %v507
    %615 = vmatprep.subr.mxu0 0.0
    %616 = vmatpush1.msra.mxu0 %v508
    %617 = vmatprep.subr.mxu0 0.0
    %618 = vmatpush1.msra.mxu0 %v509
    %619 = vmatprep.subr.mxu0 0.0
    %620 = vmatpush1.msra.mxu0 %v510
    %621 = vmatprep.subr.mxu0 0.0
    %622 = vmatpush1.msra.mxu0 %v511
    %623 = vmatprep.subr.mxu0 0.0
    %624 = vmatpush1.msra.mxu0 %v512
    %625 = vmatprep.subr.mxu0 0.0
    %626 = vmatpush1.msra.mxu0 %v513
    %627 = vmatprep.subr.mxu0 0.0
    %628 = vmatpush1.msra.mxu0 %v514
    %629 = vmatprep.subr.mxu0 0.0
    %630 = vmatpush1.msra.mxu0 %v515
    %631 = vmatprep.subr.mxu0 0.0
    %632 = vmatpush1.msra.mxu0 %v516
    %633 = vmatprep.subr.mxu0 0.0
    %634 = vmatpush1.msra.mxu0 %v517
    %635 = vmatprep.subr.mxu0 0.0
    %636 = vmatpush1.msra.mxu0 0.0
    %637 = vmatprep.subr.mxu0 0.0
    %638 = vmatpush1.msra.mxu0 0.0
    %639 = vmatprep.subr.mxu0 0.0
    %640 = vmatpush1.msra.mxu0 0.0
    %641 = vmatprep.subr.mxu0 0.0
    %642 = vmatpush1.msra.mxu0 0.0
    %643 = vmatprep.subr.mxu0 0.0
    %644 = vmatpush1.msra.mxu0 0.0
    %645 = vmatprep.subr.mxu0 0.0
    %646 = vmatpush1.msra.mxu0 0.0
    %647 = vmatprep.subr.mxu0 0.0
    %648 = vmatpush1.msra.mxu0 0.0
    %649 = vmatprep.subr.mxu0 0.0
    %650 = vmatpush1.msra.mxu0 0.0
    %651 = vmatprep.subr.mxu0 0.0
    %652 = vmatpush1.msra.mxu0 0.0
    %653 = vmatprep.subr.mxu0 0.0
    %654 = vmatpush1.msra.mxu0 0.0
    %655 = vmatprep.subr.mxu0 0.0
    %656 = vmatpush1.msra.mxu0 0.0
    %657 = vmatprep.subr.mxu0 0.0
    %658 = vmatpush1.msra.mxu0 0.0
    %659 = vmatprep.subr.mxu0 0.0
    %660 = vmatpush1.msra.mxu0 0.0
    %661 = vmatprep.subr.mxu0 0.0
    %662 = vmatpush1.msra.mxu0 0.0
    %663 = vmatprep.subr.mxu0 0.0
    %664 = vmatpush1.msra.mxu0 0.0
    %665 = vmatprep.subr.mxu0 0.0
    %666 = vmatpush1.msra.mxu0 0.0
    %667 = vmatprep.mubr.f32.mxu0 0.0
    %668 = vmatmul.mubr.f32.gmra.mrb[0].mxu0 %v465
    %v669 = vpop.f32.mrb[0].mxu0
    %v670 = vadd.f32 %v585, %v669
    %v671 = vpop.f32.mrb[0].mxu0
    %672 = vmatprep.mubr.f32.mxu0 0.0
    %673 = vmatmul.mubr.f32.gmra.mrb[0].mxu0 %v466
    %v674 = vpop.f32.mrb[0].mxu0
    %v675 = vadd.f32 %v590, %v674
    %v676 = vpop.f32.mrb[0].mxu0
    %677 = vmatprep.mubr.f32.mxu0 0.0
    %678 = vmatmul.mubr.f32.gmra.mrb[0].mxu0 %v467
    %v679 = vpop.f32.mrb[0].mxu0
    %v680 = vadd.f32 %v595, %v679
    %v681 = vpop.f32.mrb[0].mxu0
    %682 = vmatprep.mubr.f32.mxu0 0.0
    %683 = vmatmul.mubr.f32.gmra.mrb[0].mxu0 %v468
    %v684 = vpop.f32.mrb[0].mxu0
    %v685 = vadd.f32 %v600, %v684
    %v686 = vpop.f32.mrb[0].mxu0
    %687 = vdwg.mxu0
    %v688 = vadd.f32 %v670, %v675
    %v689 = vadd.f32 %v688, %v680
    %v690 = vadd.f32 %v689, %v685
    %v691 = vrot.slane %v690, 4
    %v692 = vadd.f32 %v690, %v691
    %v693 = vrot.slane %v692, 2
    %v694 = vadd.f32 %v692, %v693
    %v695 = vrot.slane %v694, 1
    %v696 = vadd.f32 %v694, %v695
    %v697 = vmul.f32 %v670, %v670
    %v698 = vmul.f32 %v675, %v675
    %v699 = vmul.f32 %v680, %v680
    %v700 = vmul.f32 %v685, %v685
    %v701 = vadd.f32 %v697, %v698
    %v702 = vadd.f32 %v701, %v699
    %v703 = vadd.f32 %v702, %v700
    %v704 = vrot.slane %v703, 4
    %v705 = vadd.f32 %v703, %v704
    %v706 = vrot.slane %v705, 2
    %v707 = vadd.f32 %v705, %v706
    %v708 = vrot.slane %v707, 1
    %v709 = vadd.f32 %v707, %v708
    %v710 = vsel %vm345, %v696, %v709
    %711 = vmatprep.subr.mxu0 0.0
    %712 = vmatpush1.msra.mxu0 %v77
    %713 = vmatprep.subr.mxu0 0.0
    %714 = vmatpush1.msra.mxu0 %v78
    %715 = vmatprep.subr.mxu0 0.0
    %716 = vmatpush1.msra.mxu0 %v79
    %717 = vmatprep.subr.mxu0 0.0
    %718 = vmatpush1.msra.mxu0 %v80
    %719 = vmatprep.subr.mxu0 0.0
    %720 = vmatpush1.msra.mxu0 %v81
    %721 = vmatprep.subr.mxu0 0.0
    %722 = vmatpush1.msra.mxu0 %v82
    %723 = vmatprep.subr.mxu0 0.0
    %724 = vmatpush1.msra.mxu0 %v83
    %725 = vmatprep.subr.mxu0 0.0
    %726 = vmatpush1.msra.mxu0 %v84
    %727 = vmatprep.subr.mxu0 0.0
    %728 = vmatpush1.msra.mxu0 %v85
    %729 = vmatprep.subr.mxu0 0.0
    %730 = vmatpush1.msra.mxu0 %v86
    %731 = vmatprep.subr.mxu0 0.0
    %732 = vmatpush1.msra.mxu0 %v87
    %733 = vmatprep.subr.mxu0 0.0
    %734 = vmatpush1.msra.mxu0 %v88
    %735 = vmatprep.subr.mxu0 0.0
    %736 = vmatpush1.msra.mxu0 %v89
    %737 = vmatprep.subr.mxu0 0.0
    %738 = vmatpush1.msra.mxu0 %v90
    %739 = vmatprep.subr.mxu0 0.0
    %740 = vmatpush1.msra.mxu0 %v91
    %741 = vmatprep.subr.mxu0 0.0
    %742 = vmatpush1.msra.mxu0 %v92
    %743 = vmatprep.subr.mxu0 0.0
    %744 = vmatpush1.msra.mxu0 0.0
    %745 = vmatprep.subr.mxu0 0.0
    %746 = vmatpush1.msra.mxu0 0.0
    %747 = vmatprep.subr.mxu0 0.0
    %748 = vmatpush1.msra.mxu0 0.0
    %749 = vmatprep.subr.mxu0 0.0
    %750 = vmatpush1.msra.mxu0 0.0
    %751 = vmatprep.subr.mxu0 0.0
    %752 = vmatpush1.msra.mxu0 0.0
    %753 = vmatprep.subr.mxu0 0.0
    %754 = vmatpush1.msra.mxu0 0.0
    %755 = vmatprep.subr.mxu0 0.0
    %756 = vmatpush1.msra.mxu0 0.0
    %757 = vmatprep.subr.mxu0 0.0
    %758 = vmatpush1.msra.mxu0 0.0
    %759 = vmatprep.subr.mxu0 0.0
    %760 = vmatpush1.msra.mxu0 0.0
    %761 = vmatprep.subr.mxu0 0.0
    %762 = vmatpush1.msra.mxu0 0.0
    %763 = vmatprep.subr.mxu0 0.0
    %764 = vmatpush1.msra.mxu0 0.0
    %765 = vmatprep.subr.mxu0 0.0
    %766 = vmatpush1.msra.mxu0 0.0
    %767 = vmatprep.subr.mxu0 0.0
    %768 = vmatpush1.msra.mxu0 0.0
    %769 = vmatprep.subr.mxu0 0.0
    %770 = vmatpush1.msra.mxu0 0.0
    %771 = vmatprep.subr.mxu0 0.0
    %772 = vmatpush1.msra.mxu0 0.0
    %773 = vmatprep.subr.mxu0 0.0
    %774 = vmatpush1.msra.mxu0 0.0
    %775 = vmatprep.mubr.f32.mxu0 0.0
    %776 = vmatmul.mubr.f32.gmra.mrb[0].mxu0 %v710
    %v777 = vpop.f32.mrb[0].mxu0
    %v778 = vadd.f32 0.0, %v777
    %v779 = vpop.f32.mrb[0].mxu0
    %780 = vdwg.mxu0
    %v781 = vmul.f32 %v778, %v778
    %v783 = vrot.slane %v781, 7
    %v785 = vsub.f32 %v778, %v783
    %v786 = vmax.f32 %v785, 0.0
    %v787 = vld [vmem:[%s3 + $0x1] sm:$0x1]
    %v788 = vadd.f32 %v786, 1e-05
    %v789 = vrsqrt.pop %v788
    %v791 = vrot.slane %v789, 1
    %v793 = vmul.f32 %v787, %v791
    %v794 = vld [vmem:[%s4 + $0x1] sm:$0x1]
    %v795 = vmul.f32 %v793, %v778
    %v796 = vsub.f32 %v794, %v795
    %v797 = vlaneseq
    %v798 = vshrl.u32 %v797, 7
    %v799 = vsub.s32 0, %v798
    %v800 = vrot.slane %v793, %v799
    %v801 = vmul.f32 %v670, %v800
    %v802 = vmul.f32 %v675, %v800
    %v803 = vmul.f32 %v680, %v800
    %v804 = vmul.f32 %v685, %v800
    %v805 = vlaneseq
    %v806 = vshrl.u32 %v805, 7
    %v807 = vsub.s32 0, %v806
    %v808 = vrot.slane %v796, %v807
    %v809 = vadd.f32 %v801, %v808
    %v810 = vadd.f32 %v802, %v808
    %v811 = vadd.f32 %v803, %v808
    %v812 = vadd.f32 %v804, %v808
    %v813 = vmax.f32 %v809, 0.0
    %v814 = vmax.f32 %v810, 0.0
    %v815 = vmax.f32 %v811, 0.0
    %v816 = vmax.f32 %v812, 0.0
    %817 = vst [vmem:[#allocation2 + $0x8] sm:$0xff] %v813
    %818 = vst [vmem:[#allocation2 + $0x10] sm:$0xff] %v814
    %819 = vst [vmem:[#allocation2 + $0x28] sm:$0xff] %v815
    %820 = vst [vmem:[#allocation2 + $0x30] sm:$0xff] %v816
    %v821 = vld [vmem:[#allocation2 + $0x7] sm:$0xff]
    %v822 = vld [vmem:[#allocation2 + $0xf] sm:$0xff]
    %v823 = vld [vmem:[#allocation2 + $0x27] sm:$0xff]
    %v824 = vld [vmem:[#allocation2 + $0x2f] sm:$0xff]
    %v825 = vld [vmem:[#allocation2 + $0x8] sm:$0xff]
    %v826 = vld [vmem:[#allocation2 + $0x10] sm:$0xff]
    %v827 = vld [vmem:[#allocation2 + $0x28] sm:$0xff]
    %v828 = vld [vmem:[#allocation2 + $0x30] sm:$0xff]
    %v829 = vld [vmem:[#allocation2 + $0x9] sm:$0xff]
    %v830 = vld [vmem:[#allocation2 + $0x11] sm:$0xff]
    %v831 = vld [vmem:[#allocation2 + $0x29] sm:$0xff]
    %v832 = vld [vmem:[#allocation2 + $0x31] sm:$0xff]
    %s833 = scalar_lea.vmem [#allocation6], 768
    %v834 = vld [vmem:[%s833] sm:$0xff]
    %v835 = vld [vmem:[%s833 + $0x8] sm:$0xff]
    %v836 = vld [vmem:[%s833 + $0x10] sm:$0xff]
    %v837 = vld [vmem:[%s833 + $0x18] sm:$0xff]
    %v838 = vld [vmem:[%s833 + $0x20] sm:$0xff]
    %v839 = vld [vmem:[%s833 + $0x28] sm:$0xff]
    %v840 = vld [vmem:[%s833 + $0x30] sm:$0xff]
    %v841 = vld [vmem:[%s833 + $0x38] sm:$0xff]
    %v842 = vld [vmem:[%s833 + $0x40] sm:$0xff]
    %v843 = vld [vmem:[%s833 + $0x48] sm:$0xff]
    %v844 = vld [vmem:[%s833 + $0x50] sm:$0xff]
    %v845 = vld [vmem:[%s833 + $0x58] sm:$0xff]
    %v846 = vld [vmem:[%s833 + $0x60] sm:$0xff]
    %v847 = vld [vmem:[%s833 + $0x68] sm:$0xff]
    %v848 = vld [vmem:[%s833 + $0x70] sm:$0xff]
    %v849 = vld [vmem:[%s833 + $0x78] sm:$0xff]
    %v850 = vld [vmem:[%s833 + $0x80] sm:$0xff]
    %v851 = vld [vmem:[%s833 + $0x88] sm:$0xff]
    %v852 = vld [vmem:[%s833 + $0x90] sm:$0xff]
    %v853 = vld [vmem:[%s833 + $0x98] sm:$0xff]
    %v854 = vld [vmem:[%s833 + $0xa0] sm:$0xff]
    %v855 = vld [vmem:[%s833 + $0xa8] sm:$0xff]
    %v856 = vld [vmem:[%s833 + $0xb0] sm:$0xff]
    %v857 = vld [vmem:[%s833 + $0xb8] sm:$0xff]
    %v858 = vld [vmem:[%s833 + $0xc0] sm:$0xff]
    %v859 = vld [vmem:[%s833 + $0xc8] sm:$0xff]
    %v860 = vld [vmem:[%s833 + $0xd0] sm:$0xff]
    %v861 = vld [vmem:[%s833 + $0xd8] sm:$0xff]
    %v862 = vld [vmem:[%s833 + $0xe0] sm:$0xff]
    %v863 = vld [vmem:[%s833 + $0xe8] sm:$0xff]
    %v864 = vld [vmem:[%s833 + $0xf0] sm:$0xff]
    %v865 = vld [vmem:[%s833 + $0xf8] sm:$0xff]
    %v866 = vld [vmem:[%s833 + $0x100] sm:$0xff]
    %v867 = vld [vmem:[%s833 + $0x108] sm:$0xff]
    %v868 = vld [vmem:[%s833 + $0x110] sm:$0xff]
    %v869 = vld [vmem:[%s833 + $0x118] sm:$0xff]
    %v870 = vld [vmem:[%s833 + $0x120] sm:$0xff]
    %v871 = vld [vmem:[%s833 + $0x128] sm:$0xff]
    %v872 = vld [vmem:[%s833 + $0x130] sm:$0xff]
    %v873 = vld [vmem:[%s833 + $0x138] sm:$0xff]
    %v874 = vld [vmem:[%s833 + $0x140] sm:$0xff]
    %v875 = vld [vmem:[%s833 + $0x148] sm:$0xff]
    %v876 = vld [vmem:[%s833 + $0x150] sm:$0xff]
    %v877 = vld [vmem:[%s833 + $0x158] sm:$0xff]
    %v878 = vld [vmem:[%s833 + $0x160] sm:$0xff]
    %v879 = vld [vmem:[%s833 + $0x168] sm:$0xff]
    %v880 = vld [vmem:[%s833 + $0x170] sm:$0xff]
    %v881 = vld [vmem:[%s833 + $0x178] sm:$0xff]
    %882 = vmatprep.subr.mxu0 0.0
    %883 = vmatpush1.msra.mxu0 %v834
    %884 = vmatprep.subr.mxu0 0.0
    %885 = vmatpush1.msra.mxu0 %v835
    %886 = vmatprep.subr.mxu0 0.0
    %887 = vmatpush1.msra.mxu0 %v836
    %888 = vmatprep.subr.mxu0 0.0
    %889 = vmatpush1.msra.mxu0 %v837
    %890 = vmatprep.subr.mxu0 0.0
    %891 = vmatpush1.msra.mxu0 %v838
    %892 = vmatprep.subr.mxu0 0.0
    %893 = vmatpush1.msra.mxu0 %v839
    %894 = vmatprep.subr.mxu0 0.0
    %895 = vmatpush1.msra.mxu0 %v840
    %896 = vmatprep.subr.mxu0 0.0
    %897 = vmatpush1.msra.mxu0 %v841
    %898 = vmatprep.subr.mxu0 0.0
    %899 = vmatpush1.msra.mxu0 %v842
    %900 = vmatprep.subr.mxu0 0.0
    %901 = vmatpush1.msra.mxu0 %v843
    %902 = vmatprep.subr.mxu0 0.0
    %903 = vmatpush1.msra.mxu0 %v844
    %904 = vmatprep.subr.mxu0 0.0
    %905 = vmatpush1.msra.mxu0 %v845
    %906 = vmatprep.subr.mxu0 0.0
    %907 = vmatpush1.msra.mxu0 %v846
    %908 = vmatprep.subr.mxu0 0.0
    %909 = vmatpush1.msra.mxu0 %v847
    %910 = vmatprep.subr.mxu0 0.0
    %911 = vmatpush1.msra.mxu0 %v848
    %912 = vmatprep.subr.mxu0 0.0
    %913 = vmatpush1.msra.mxu0 %v849
    %914 = vmatprep.subr.mxu0 0.0
    %915 = vmatpush1.msra.mxu0 %v850
    %916 = vmatprep.subr.mxu0 0.0
    %917 = vmatpush1.msra.mxu0 %v851
    %918 = vmatprep.subr.mxu0 0.0
    %919 = vmatpush1.msra.mxu0 %v852
    %920 = vmatprep.subr.mxu0 0.0
    %921 = vmatpush1.msra.mxu0 %v853
    %922 = vmatprep.subr.mxu0 0.0
    %923 = vmatpush1.msra.mxu0 %v854
    %924 = vmatprep.subr.mxu0 0.0
    %925 = vmatpush1.msra.mxu0 %v855
    %926 = vmatprep.subr.mxu0 0.0
    %927 = vmatpush1.msra.mxu0 %v856
    %928 = vmatprep.subr.mxu0 0.0
    %929 = vmatpush1.msra.mxu0 %v857
    %930 = vmatprep.subr.mxu0 0.0
    %931 = vmatpush1.msra.mxu0 %v858
    %932 = vmatprep.subr.mxu0 0.0
    %933 = vmatpush1.msra.mxu0 %v859
    %934 = vmatprep.subr.mxu0 0.0
    %935 = vmatpush1.msra.mxu0 %v860
    %936 = vmatprep.subr.mxu0 0.0
    %937 = vmatpush1.msra.mxu0 %v861
    %938 = vmatprep.subr.mxu0 0.0
    %939 = vmatpush1.msra.mxu0 %v862
    %940 = vmatprep.subr.mxu0 0.0
    %941 = vmatpush1.msra.mxu0 %v863
    %942 = vmatprep.subr.mxu0 0.0
    %943 = vmatpush1.msra.mxu0 %v864
    %944 = vmatprep.subr.mxu0 0.0
    %945 = vmatpush1.msra.mxu0 %v865
    %946 = vmatprep.mubr.f32.mxu0 %v825
    %947 = vmatmul.mubr.f32.gmra.mrb[0].mxu0 %v821
    %v948 = vpop.f32.mrb[0].mxu0
    %v949 = vadd.f32 0.0, %v948
    %v950 = vpop.f32.mrb[0].mxu0
    %951 = vmatprep.mubr.f32.mxu0 %v826
    %952 = vmatmul.mubr.f32.gmra.mrb[0].mxu0 %v822
    %v953 = vpop.f32.mrb[0].mxu0
    %v954 = vadd.f32 0.0, %v953
    %v955 = vpop.f32.mrb[0].mxu0
    %956 = vmatprep.mubr.f32.mxu0 %v827
    %957 = vmatmul.mubr.f32.gmra.mrb[0].mxu0 %v823
    %v958 = vpop.f32.mrb[0].mxu0
    %v959 = vadd.f32 0.0, %v958
    %v960 = vpop.f32.mrb[0].mxu0
    %961 = vmatprep.mubr.f32.mxu0 %v828
    %962 = vmatmul.mubr.f32.gmra.mrb[0].mxu0 %v824
    %v963 = vpop.f32.mrb[0].mxu0
    %v964 = vadd.f32 0.0, %v963
    %v965 = vpop.f32.mrb[0].mxu0
    %966 = vdwg.mxu0
    %967 = vmatprep.subr.mxu0 0.0
    %968 = vmatpush1.msra.mxu0 %v866
    %969 = vmatprep.subr.mxu0 0.0
    %970 = vmatpush1.msra.mxu0 %v867
    %971 = vmatprep.subr.mxu0 0.0
    %972 = vmatpush1.msra.mxu0 %v868
    %973 = vmatprep.subr.mxu0 0.0
    %974 = vmatpush1.msra.mxu0 %v869
    %975 = vmatprep.subr.mxu0 0.0
    %976 = vmatpush1.msra.mxu0 %v870
    %977 = vmatprep.subr.mxu0 0.0
    %978 = vmatpush1.msra.mxu0 %v871
    %979 = vmatprep.subr.mxu0 0.0
    %980 = vmatpush1.msra.mxu0 %v872
    %981 = vmatprep.subr.mxu0 0.0
    %982 = vmatpush1.msra.mxu0 %v873
    %983 = vmatprep.subr.mxu0 0.0
    %984 = vmatpush1.msra.mxu0 %v874
    %985 = vmatprep.subr.mxu0 0.0
    %986 = vmatpush1.msra.mxu0 %v875
    %987 = vmatprep.subr.mxu0 0.0
    %988 = vmatpush1.msra.mxu0 %v876
    %989 = vmatprep.subr.mxu0 0.0
    %990 = vmatpush1.msra.mxu0 %v877
    %991 = vmatprep.subr.mxu0 0.0
    %992 = vmatpush1.msra.mxu0 %v878
    %993 = vmatprep.subr.mxu0 0.0
    %994 = vmatpush1.msra.mxu0 %v879
    %995 = vmatprep.subr.mxu0 0.0
    %996 = vmatpush1.msra.mxu0 %v880
    %997 = vmatprep.subr.mxu0 0.0
    %998 = vmatpush1.msra.mxu0 %v881
    %999 = vmatprep.subr.mxu0 0.0
    %1000 = vmatpush1.msra.mxu0 0.0
    %1001 = vmatprep.subr.mxu0 0.0
    %1002 = vmatpush1.msra.mxu0 0.0
    %1003 = vmatprep.subr.mxu0 0.0
    %1004 = vmatpush1.msra.mxu0 0.0
    %1005 = vmatprep.subr.mxu0 0.0
    %1006 = vmatpush1.msra.mxu0 0.0
    %1007 = vmatprep.subr.mxu0 0.0
    %1008 = vmatpush1.msra.mxu0 0.0
    %1009 = vmatprep.subr.mxu0 0.0
    %1010 = vmatpush1.msra.mxu0 0.0
    %1011 = vmatprep.subr.mxu0 0.0
    %1012 = vmatpush1.msra.mxu0 0.0
    %1013 = vmatprep.subr.mxu0 0.0
    %1014 = vmatpush1.msra.mxu0 0.0
    %1015 = vmatprep.subr.mxu0 0.0
    %1016 = vmatpush1.msra.mxu0 0.0
    %1017 = vmatprep.subr.mxu0 0.0
    %1018 = vmatpush1.msra.mxu0 0.0
    %1019 = vmatprep.subr.mxu0 0.0
    %1020 = vmatpush1.msra.mxu0 0.0
    %1021 = vmatprep.subr.mxu0 0.0
    %1022 = vmatpush1.msra.mxu0 0.0
    %1023 = vmatprep.subr.mxu0 0.0
    %1024 = vmatpush1.msra.mxu0 0.0
    %1025 = vmatprep.subr.mxu0 0.0
    %1026 = vmatpush1.msra.mxu0 0.0
    %1027 = vmatprep.subr.mxu0 0.0
    %1028 = vmatpush1.msra.mxu0 0.0
    %1029 = vmatprep.subr.mxu0 0.0
    %1030 = vmatpush1.msra.mxu0 0.0
    %1031 = vmatprep.mubr.f32.mxu0 0.0
    %1032 = vmatmul.mubr.f32.gmra.mrb[0].mxu0 %v829
    %v1033 = vpop.f32.mrb[0].mxu0
    %v1034 = vadd.f32 %v949, %v1033
    %v1035 = vpop.f32.mrb[0].mxu0
    %1036 = vmatprep.mubr.f32.mxu0 0.0
    %1037 = vmatmul.mubr.f32.gmra.mrb[0].mxu0 %v830
    %v1038 = vpop.f32.mrb[0].mxu0
    %v1039 = vadd.f32 %v954, %v1038
    %v1040 = vpop.f32.mrb[0].mxu0
    %1041 = vmatprep.mubr.f32.mxu0 0.0
    %1042 = vmatmul.mubr.f32.gmra.mrb[0].mxu0 %v831
    %v1043 = vpop.f32.mrb[0].mxu0
    %v1044 = vadd.f32 %v959, %v1043
    %v1045 = vpop.f32.mrb[0].mxu0
    %1046 = vmatprep.mubr.f32.mxu0 0.0
    %1047 = vmatmul.mubr.f32.gmra.mrb[0].mxu0 %v832
    %v1048 = vpop.f32.mrb[0].mxu0
    %v1049 = vadd.f32 %v964, %v1048
    %v1050 = vpop.f32.mrb[0].mxu0
    %1051 = vdwg.mxu0
    %v1052 = vadd.f32 %v1034, %v1039
    %v1053 = vadd.f32 %v1052, %v1044
    %v1054 = vadd.f32 %v1053, %v1049
    %v1055 = vrot.slane %v1054, 4
    %v1056 = vadd.f32 %v1054, %v1055
    %v1057 = vrot.slane %v1056, 2
    %v1058 = vadd.f32 %v1056, %v1057
    %v1059 = vrot.slane %v1058, 1
    %v1060 = vadd.f32 %v1058, %v1059
    %v1061 = vmul.f32 %v1034, %v1034
    %v1062 = vmul.f32 %v1039, %v1039
    %v1063 = vmul.f32 %v1044, %v1044
    %v1064 = vmul.f32 %v1049, %v1049
    %v1065 = vadd.f32 %v1061, %v1062
    %v1066 = vadd.f32 %v1065, %v1063
    %v1067 = vadd.f32 %v1066, %v1064
    %v1068 = vrot.slane %v1067, 4
    %v1069 = vadd.f32 %v1067, %v1068
    %v1070 = vrot.slane %v1069, 2
    %v1071 = vadd.f32 %v1069, %v1070
    %v1072 = vrot.slane %v1071, 1
    %v1073 = vadd.f32 %v1071, %v1072
    %v1074 = vsel %vm345, %v1060, %v1073
    %1075 = vmatprep.subr.mxu0 0.0
    %1076 = vmatpush1.msra.mxu0 %v77
    %1077 = vmatprep.subr.mxu0 0.0
    %1078 = vmatpush1.msra.mxu0 %v78
    %1079 = vmatprep.subr.mxu0 0.0
    %1080 = vmatpush1.msra.mxu0 %v79
    %1081 = vmatprep.subr.mxu0 0.0
    %1082 = vmatpush1.msra.mxu0 %v80
    %1083 = vmatprep.subr.mxu0 0.0
    %1084 = vmatpush1.msra.mxu0 %v81
    %1085 = vmatprep.subr.mxu0 0.0
    %1086 = vmatpush1.msra.mxu0 %v82
    %1087 = vmatprep.subr.mxu0 0.0
    %1088 = vmatpush1.msra.mxu0 %v83
    %1089 = vmatprep.subr.mxu0 0.0
    %1090 = vmatpush1.msra.mxu0 %v84
    %1091 = vmatprep.subr.mxu0 0.0
    %1092 = vmatpush1.msra.mxu0 %v85
    %1093 = vmatprep.subr.mxu0 0.0
    %1094 = vmatpush1.msra.mxu0 %v86
    %1095 = vmatprep.subr.mxu0 0.0
    %1096 = vmatpush1.msra.mxu0 %v87
    %1097 = vmatprep.subr.mxu0 0.0
    %1098 = vmatpush1.msra.mxu0 %v88
    %1099 = vmatprep.subr.mxu0 0.0
    %1100 = vmatpush1.msra.mxu0 %v89
    %1101 = vmatprep.subr.mxu0 0.0
    %1102 = vmatpush1.msra.mxu0 %v90
    %1103 = vmatprep.subr.mxu0 0.0
    %1104 = vmatpush1.msra.mxu0 %v91
    %1105 = vmatprep.subr.mxu0 0.0
    %1106 = vmatpush1.msra.mxu0 %v92
    %1107 = vmatprep.subr.mxu0 0.0
    %1108 = vmatpush1.msra.mxu0 0.0
    %1109 = vmatprep.subr.mxu0 0.0
    %1110 = vmatpush1.msra.mxu0 0.0
    %1111 = vmatprep.subr.mxu0 0.0
    %1112 = vmatpush1.msra.mxu0 0.0
    %1113 = vmatprep.subr.mxu0 0.0
    %1114 = vmatpush1.msra.mxu0 0.0
    %1115 = vmatprep.subr.mxu0 0.0
    %1116 = vmatpush1.msra.mxu0 0.0
    %1117 = vmatprep.subr.mxu0 0.0
    %1118 = vmatpush1.msra.mxu0 0.0
    %1119 = vmatprep.subr.mxu0 0.0
    %1120 = vmatpush1.msra.mxu0 0.0
    %1121 = vmatprep.subr.mxu0 0.0
    %1122 = vmatpush1.msra.mxu0 0.0
    %1123 = vmatprep.subr.mxu0 0.0
    %1124 = vmatpush1.msra.mxu0 0.0
    %1125 = vmatprep.subr.mxu0 0.0
    %1126 = vmatpush1.msra.mxu0 0.0
    %1127 = vmatprep.subr.mxu0 0.0
    %1128 = vmatpush1.msra.mxu0 0.0
    %1129 = vmatprep.subr.mxu0 0.0
    %1130 = vmatpush1.msra.mxu0 0.0
    %1131 = vmatprep.subr.mxu0 0.0
    %1132 = vmatpush1.msra.mxu0 0.0
    %1133 = vmatprep.subr.mxu0 0.0
    %1134 = vmatpush1.msra.mxu0 0.0
    %1135 = vmatprep.subr.mxu0 0.0
    %1136 = vmatpush1.msra.mxu0 0.0
    %1137 = vmatprep.subr.mxu0 0.0
    %1138 = vmatpush1.msra.mxu0 0.0
    %1139 = vmatprep.mubr.f32.mxu0 0.0
    %1140 = vmatmul.mubr.f32.gmra.mrb[0].mxu0 %v1074
    %v1141 = vpop.f32.mrb[0].mxu0
    %v1142 = vadd.f32 0.0, %v1141
    %v1143 = vpop.f32.mrb[0].mxu0
    %1144 = vdwg.mxu0
    %v1145 = vmul.f32 %v1142, %v1142
    %v1147 = vrot.slane %v1145, 7
    %v1149 = vsub.f32 %v1142, %v1147
    %v1150 = vmax.f32 %v1149, 0.0
    %v1151 = vld [vmem:[%s3 + $0x2] sm:$0x1]
    %v1152 = vadd.f32 %v1150, 1e-05
    %v1153 = vrsqrt.pop %v1152
    %v1155 = vrot.slane %v1153, 1
    %v1157 = vmul.f32 %v1151, %v1155
    %v1158 = vld [vmem:[%s4 + $0x2] sm:$0x1]
    %v1159 = vmul.f32 %v1157, %v1142
    %v1160 = vsub.f32 %v1158, %v1159
    %v1161 = vlaneseq
    %v1162 = vshrl.u32 %v1161, 7
    %v1163 = vsub.s32 0, %v1162
    %v1164 = vrot.slane %v1157, %v1163
    %v1165 = vmul.f32 %v1034, %v1164
    %v1166 = vmul.f32 %v1039, %v1164
    %v1167 = vmul.f32 %v1044, %v1164
    %v1168 = vmul.f32 %v1049, %v1164
    %v1169 = vlaneseq
    %v1170 = vshrl.u32 %v1169, 7
    %v1171 = vsub.s32 0, %v1170
    %v1172 = vrot.slane %v1160, %v1171
    %v1173 = vadd.f32 %v1165, %v1172
    %v1174 = vadd.f32 %v1166, %v1172
    %v1175 = vadd.f32 %v1167, %v1172
    %v1176 = vadd.f32 %v1168, %v1172
    %v1177 = vmax.f32 %v1173, 0.0
    %v1178 = vmax.f32 %v1174, 0.0
    %v1179 = vmax.f32 %v1175, 0.0
    %v1180 = vmax.f32 %v1176, 0.0
    %1181 = vst [vmem:[#allocation9] sm:$0xff] %v1177
    %1182 = vst [vmem:[#allocation9 + $0x8] sm:$0xff] %v1178
    %1183 = vst [vmem:[#allocation9 + $0x10] sm:$0xff] %v1179
    %1184 = vst [vmem:[#allocation9 + $0x18] sm:$0xff] %v1180
    // Predicated region
    $region34: #{tpu_custom_call.1} parent=1 // pred_check
      _
    $region35: #{tpu_custom_call.1} parent=1 // pred_check_branch
      %1186 = sbr.rel (0) target = $region37
    $region36: #{tpu_custom_call.1} parent=1 // pred_region
      %s1188 = ssub.s32 512, 512
      %1189 = vsyncadd [#allocation5], %s1188
      %s1190 = sshll.u32 [#allocation9], 4
      %s1191 = int_to_ptr.vmem [resolvable:$true] %s1190
      %1196 = dma.vmem_to_hbm [thread:$0]  %s1191, 512, %s5, [#allocation5], 128, 128, 8
    $region37: #{tpu_custom_call.1} parent=1 // pred_fallthru
      _
    // Predicated region
    $region38: #{tpu_custom_call.1} parent=1 // pred_check
      _
    $region39: #{tpu_custom_call.1} parent=1 // pred_check_branch
      %1198 = sbr.rel (0) target = $region41
    $region40: #{tpu_custom_call.1} parent=1 // pred_region
      %1199 = dma.done [#allocation5], 512
    $region41: #{tpu_custom_call.1} parent=1 // pred_fallthru
      _
    %1200 = vsyncpa [#allocation4], 1
    %1201 = vsyncpa [#allocation7], 1
    %1202 = vsyncpa [#allocation5], 1

</llo_original>
